<compile_context>
chip_gen: v7x
topology: tpu7x:2x2x1
jax: 0.10.0
libtpu: 0.0.40
codegen_flags: <defaults>
</compile_context>

<pallas_src>
import functools

import jax
import jax.numpy as jnp
from jax.experimental import pallas as pl
from jax.experimental.pallas import tpu as pltpu


# ----------------------------------------------------------------------------
# Kernel: one batch-block of images per grid step, both layers fused.
# ----------------------------------------------------------------------------
def _fused_backbone_kernel(x_ref, w1_ref, w2_ref, b_ref, o_ref, h1p_ref, *,
                           B, H, W, C_mid, C_out):
    """conv3x3+bias+ReLU -> conv3x3+bias+ReLU in lane-packed (row, W*C) form.

    x_ref:   (B, H+2, W*C_in)      bf16  row-padded, lane-packed images
    w1_ref:  (3, W*C_in,  W*C_mid) bf16  banded weights, one matrix per kh
    w2_ref:  (3, W*C_mid, W*C_out) bf16
    b_ref:   (2, cb)               f32   row0 = tile(b1, W), row1 = tile(b2, W)
    o_ref:   (B, H, W*C_out)       f32   lane-dense output slab
    h1p_ref: (H+2, W*C_mid)        bf16  row-padded intermediate (VMEM scratch)
    """
    # Zero only the 1-row halo of the scratch; the interior (rows 1..H) is
    # fully overwritten for every image.  Done per step (tiny) so it is safe
    # under megacore sharding of the grid axis.
    zero_row = jnp.zeros((1, W * C_mid), jnp.bfloat16)
    h1p_ref[pl.ds(0, 1), :] = zero_row
    h1p_ref[pl.ds(H + 1, 1), :] = zero_row

    for b in range(B):                       # small static per-image loop
        xb = x_ref[b]                        # (H+2, W*C_in) bf16, loaded once

        # ---- layer 1: 3 banded matmuls (one per kernel row), f32 accumulate.
        acc = jnp.zeros((H, W * C_mid), jnp.float32)
        for di in range(3):
            acc = acc + jnp.dot(xb[di:di + H, :], w1_ref[di],
                                preferred_element_type=jnp.float32)
        h1 = jnp.maximum(acc + b_ref[0:1, :W * C_mid], 0.0)
        h1p_ref[pl.ds(1, H), :] = h1.astype(jnp.bfloat16)   # cast once

        # ---- layer 2: same structure, reading row-shifted scratch slices.
        acc = jnp.zeros((H, W * C_out), jnp.float32)
        for di in range(3):
            acc = acc + jnp.dot(h1p_ref[pl.ds(di, H), :], w2_ref[di],
                                preferred_element_type=jnp.float32)
        o_ref[b] = jnp.maximum(acc + b_ref[1:2, :W * C_out],
                               0.0).astype(o_ref.dtype)


# ----------------------------------------------------------------------------
# Wrapper helpers.
# ----------------------------------------------------------------------------
def _banded_conv_weights(w_oihw, W):
    """Banded matrices for a 3x3 'same' conv in the lane-packed layout.

    Returns Wb of shape (3, W*C_in, W*C_out) with
        Wb[kh, jp*C_in + ci, j*C_out + co] = w[co, ci, kh, kw]  where jp = j+kw-1.
    Entries with jp outside [0, W) are simply absent (zero), which implements
    the column zero-padding; row padding is handled by the row halo.
    """
    C_out, C_in, KH, KW = w_oihw.shape
    mats = []
    for kh in range(KH):
        m = jnp.zeros((W * C_in, W * C_out), jnp.float32)
        for kw in range(KW):
            # sel[jp, j] = 1  iff  jp == j + kw - 1
            sel = jnp.eye(W, W, k=1 - kw, dtype=jnp.float32)
            m = m + jnp.kron(sel, w_oihw[:, :, kh, kw].T)
        mats.append(m)
    return jnp.stack(mats)


def b_pure_sparse_backbone_col_forward(x_nchw, params, *, block_n=None):
    N, C_in, H, W = x_nchw.shape
    C_mid = params["w1"].shape[0]
    C_out = params["w2"].shape[0]
    cb = max(W * C_mid, W * C_out)

    # Several images per grid step to amortize per-step overhead.
    if block_n is None:
        block_n = 1
        for cand in range(min(N, 8), 0, -1):
            if N % cand == 0:
                block_n = cand
                break
    assert N % block_n == 0

    # NCHW -> lane-packed (N, H, W*C_in); pad rows by 1 (column padding is
    # baked into the banded weights); bf16 once here (halves input DMA bytes,
    # matches the MXU operand dtype).
    x = jnp.transpose(x_nchw, (0, 2, 3, 1)).reshape(N, H, W * C_in)
    xp = jnp.pad(x, ((0, 0), (1, 1), (0, 0))).astype(jnp.bfloat16)

    w1 = _banded_conv_weights(params["w1"], W).astype(jnp.bfloat16)
    w2 = _banded_conv_weights(params["w2"], W).astype(jnp.bfloat16)

    biases = jnp.stack([
        jnp.pad(jnp.tile(params["b1"].astype(jnp.float32), W),
                (0, cb - W * C_mid)),
        jnp.pad(jnp.tile(params["b2"].astype(jnp.float32), W),
                (0, cb - W * C_out)),
    ])                                                     # (2, cb) f32

    kernel = functools.partial(_fused_backbone_kernel, B=block_n, H=H, W=W,
                               C_mid=C_mid, C_out=C_out)

    out = pl.pallas_call(
        kernel,
        out_shape=jax.ShapeDtypeStruct((N, H, W * C_out), jnp.float32),
        grid_spec=pltpu.PrefetchScalarGridSpec(
            num_scalar_prefetch=0,
            grid=(N // block_n,),
            in_specs=[
                pl.BlockSpec((block_n, H + 2, W * C_in), lambda g: (g, 0, 0)),
                pl.BlockSpec((3, W * C_in, W * C_mid), lambda g: (0, 0, 0)),
                pl.BlockSpec((3, W * C_mid, W * C_out), lambda g: (0, 0, 0)),
                pl.BlockSpec((2, cb), lambda g: (0, 0)),
            ],
            out_specs=pl.BlockSpec((block_n, H, W * C_out),
                                   lambda g: (g, 0, 0)),
            scratch_shapes=[pltpu.VMEM((H + 2, W * C_mid), jnp.bfloat16)],
        ),
        compiler_params=pltpu.CompilerParams(
            dimension_semantics=("parallel",),
            vmem_limit_bytes=32 * 1024 * 1024,
        ),
    )(xp, w1, w2, biases)

    # Lane-dense slab (N, H, W*C_out) -> NCHW (PyTorch output convention).
    return jnp.transpose(out.reshape(N, H, W, C_out), (0, 3, 1, 2))


def init_params(key, c_in=4, c_mid=8, c_out=8):
    k1, k2, k3, k4 = jax.random.split(key, 4)
    return {
        "w1": 0.1 * jax.random.normal(k1, (c_mid, c_in, 3, 3), jnp.float32),
        "b1": 0.1 * jax.random.normal(k2, (c_mid,), jnp.float32),
        "w2": 0.1 * jax.random.normal(k3, (c_out, c_mid, 3, 3), jnp.float32),
        "b2": 0.1 * jax.random.normal(k4, (c_out,), jnp.float32),
    }


if __name__ == "__main__":
    key = jax.random.PRNGKey(0)
    kx, kp = jax.random.split(key)

    # Small deterministic input: batch=2, channels=4, spatial=16x16 (NCHW).
    x = jax.random.normal(kx, (2, 4, 16, 16), jnp.float32)
    params = init_params(kp, c_in=4, c_mid=8, c_out=8)

    fwd = jax.jit(b_pure_sparse_backbone_col_forward)
    out = fwd(x, params)
    jax.block_until_ready(out)

    # Reference: same math with bf16-rounded matmul operands (what the MXU
    # consumes) and f32 accumulation, so the comparison stays tight.
    def _bf16(a):
        return a.astype(jnp.bfloat16).astype(jnp.float32)

    def ref_conv(xh, w, b):
        y = jax.lax.conv_general_dilated(
            _bf16(xh), _bf16(w), window_strides=(1, 1), padding="SAME",
            dimension_numbers=("NCHW", "OIHW", "NCHW"),
            precision=jax.lax.Precision.HIGHEST)
        return jnp.maximum(y + b[None, :, None, None], 0.0)

    ref = ref_conv(ref_conv(x, params["w1"], params["b1"]),
                   params["w2"], params["b2"])

    assert out.shape == (2, 8, 16, 16), out.shape
    assert jnp.allclose(out, ref, atol=2e-3, rtol=2e-3), (
        float(jnp.max(jnp.abs(out - ref))))

    print("KERNEL_OK")
</pallas_src>

<mosaic_0001>
module attributes {stable_mosaic.version = 11 : i64} {
  func.func @_fused_backbone_kernel(%arg0: i32, %arg1: memref<2x18x64xbf16, #tpu.memory_space<vmem>>, %arg2: memref<3x64x128xbf16, #tpu.memory_space<vmem>>, %arg3: memref<3x128x128xbf16, #tpu.memory_space<vmem>>, %arg4: memref<2x128xf32, #tpu.memory_space<vmem>>, %arg5: memref<2x16x128xf32, #tpu.memory_space<vmem>>, %arg6: memref<18x128xbf16, #tpu.memory_space<vmem>>) attributes {dimension_semantics = [#tpu.dimension_semantics<parallel>], iteration_bounds = array<i64: 1>, scalar_prefetch = 0 : i64, scratch_operands = 1 : i64, tpu.core_type = #tpu.core_type<tc>, window_params = [{transform_indices = @transform_0, window_bounds = array<i64: 2, 18, 64>}, {pipeline_mode = #tpu.pipeline_mode<synchronous>, transform_indices = @transform_1, window_bounds = array<i64: 3, 64, 128>}, {pipeline_mode = #tpu.pipeline_mode<synchronous>, transform_indices = @transform_2, window_bounds = array<i64: 3, 128, 128>}, {pipeline_mode = #tpu.pipeline_mode<synchronous>, transform_indices = @transform_3, window_bounds = array<i64: 2, 128>}, {transform_indices = @transform_4, window_bounds = array<i64: 2, 16, 128>}]} {
    %cst = arith.constant 0.000000e+00 : bf16
    %0 = vector.broadcast %cst : bf16 to vector<1x128xbf16>
    %c0 = arith.constant 0 : index
    %c0_0 = arith.constant 0 : index
    %1 = vector.load %arg6[%c0, %c0_0] : memref<18x128xbf16, #tpu.memory_space<vmem>>, vector<1x128xbf16>
    tpu.vector_store %arg6[%c0, %c0_0], %0 {strides = array<i32>} : memref<18x128xbf16, #tpu.memory_space<vmem>>, vector<1x128xbf16>,
    %c17 = arith.constant 17 : index
    %c0_1 = arith.constant 0 : index
    %2 = vector.load %arg6[%c17, %c0_1] : memref<18x128xbf16, #tpu.memory_space<vmem>>, vector<1x128xbf16>
    tpu.vector_store %arg6[%c17, %c0_1], %0 {strides = array<i32>} : memref<18x128xbf16, #tpu.memory_space<vmem>>, vector<1x128xbf16>,
    %c0_2 = arith.constant 0 : index
    %c0_3 = arith.constant 0 : index
    %c0_4 = arith.constant 0 : index
    %3 = vector.load %arg1[%c0_2, %c0_3, %c0_4] : memref<2x18x64xbf16, #tpu.memory_space<vmem>>, vector<1x18x64xbf16>
    %4 = vector.shape_cast %3 : vector<1x18x64xbf16> to vector<18x64xbf16>
    %cst_5 = arith.constant 0.000000e+00 : f32
    %5 = vector.broadcast %cst_5 : f32 to vector<16x128xf32>
    %6 = vector.extract_strided_slice %4 {offsets = [0, 0], sizes = [16, 64], strides = [1, 1]} : vector<18x64xbf16> to vector<16x64xbf16>
    %c0_6 = arith.constant 0 : index
    %c0_7 = arith.constant 0 : index
    %c0_8 = arith.constant 0 : index
    %7 = vector.load %arg2[%c0_6, %c0_7, %c0_8] : memref<3x64x128xbf16, #tpu.memory_space<vmem>>, vector<1x64x128xbf16>
    %8 = vector.shape_cast %7 : vector<1x64x128xbf16> to vector<64x128xbf16>
    %cst_9 = arith.constant dense<0.000000e+00> : vector<16x128xf32>
    %9 = tpu.matmul %6, %8, %cst_9 {dimension_numbers = #tpu.dot_dimension_numbers<[1], [0], [0], [1], [0, 0, 1, 1], [], []>} : vector<16x64xbf16>, vector<64x128xbf16>, vector<16x128xf32> -> vector<16x128xf32>
    %10 = arith.addf %5, %9 : vector<16x128xf32>
    %11 = vector.extract_strided_slice %4 {offsets = [1, 0], sizes = [16, 64], strides = [1, 1]} : vector<18x64xbf16> to vector<16x64xbf16>
    %c1 = arith.constant 1 : index
    %c0_10 = arith.constant 0 : index
    %c0_11 = arith.constant 0 : index
    %12 = vector.load %arg2[%c1, %c0_10, %c0_11] : memref<3x64x128xbf16, #tpu.memory_space<vmem>>, vector<1x64x128xbf16>
    %13 = vector.shape_cast %12 : vector<1x64x128xbf16> to vector<64x128xbf16>
    %cst_12 = arith.constant dense<0.000000e+00> : vector<16x128xf32>
    %14 = tpu.matmul %11, %13, %cst_12 {dimension_numbers = #tpu.dot_dimension_numbers<[1], [0], [0], [1], [0, 0, 1, 1], [], []>} : vector<16x64xbf16>, vector<64x128xbf16>, vector<16x128xf32> -> vector<16x128xf32>
    %15 = arith.addf %10, %14 : vector<16x128xf32>
    %16 = vector.extract_strided_slice %4 {offsets = [2, 0], sizes = [16, 64], strides = [1, 1]} : vector<18x64xbf16> to vector<16x64xbf16>
    %c2 = arith.constant 2 : index
    %c0_13 = arith.constant 0 : index
    %c0_14 = arith.constant 0 : index
    %17 = vector.load %arg2[%c2, %c0_13, %c0_14] : memref<3x64x128xbf16, #tpu.memory_space<vmem>>, vector<1x64x128xbf16>
    %18 = vector.shape_cast %17 : vector<1x64x128xbf16> to vector<64x128xbf16>
    %cst_15 = arith.constant dense<0.000000e+00> : vector<16x128xf32>
    %19 = tpu.matmul %16, %18, %cst_15 {dimension_numbers = #tpu.dot_dimension_numbers<[1], [0], [0], [1], [0, 0, 1, 1], [], []>} : vector<16x64xbf16>, vector<64x128xbf16>, vector<16x128xf32> -> vector<16x128xf32>
    %20 = arith.addf %15, %19 : vector<16x128xf32>
    %c0_16 = arith.constant 0 : index
    %c0_17 = arith.constant 0 : index
    %21 = vector.load %arg4[%c0_16, %c0_17] : memref<2x128xf32, #tpu.memory_space<vmem>>, vector<1x128xf32>
    %22 = vector.broadcast %21 : vector<1x128xf32> to vector<16x128xf32>
    %23 = arith.addf %20, %22 : vector<16x128xf32>
    %cst_18 = arith.constant 0.000000e+00 : f32
    %24 = vector.broadcast %cst_18 : f32 to vector<16x128xf32>
    %25 = arith.maximumf %23, %24 : vector<16x128xf32>
    %26 = arith.truncf %25 : vector<16x128xf32> to vector<16x128xbf16>
    %c1_19 = arith.constant 1 : index
    %c0_20 = arith.constant 0 : index
    %27 = vector.load %arg6[%c1_19, %c0_20] : memref<18x128xbf16, #tpu.memory_space<vmem>>, vector<16x128xbf16>
    tpu.vector_store %arg6[%c1_19, %c0_20], %26 {strides = array<i32>} : memref<18x128xbf16, #tpu.memory_space<vmem>>, vector<16x128xbf16>,
    %cst_21 = arith.constant 0.000000e+00 : f32
    %28 = vector.broadcast %cst_21 : f32 to vector<16x128xf32>
    %c0_22 = arith.constant 0 : index
    %c0_23 = arith.constant 0 : index
    %29 = vector.load %arg6[%c0_22, %c0_23] : memref<18x128xbf16, #tpu.memory_space<vmem>>, vector<16x128xbf16>
    %c0_24 = arith.constant 0 : index
    %c0_25 = arith.constant 0 : index
    %c0_26 = arith.constant 0 : index
    %30 = vector.load %arg3[%c0_24, %c0_25, %c0_26] : memref<3x128x128xbf16, #tpu.memory_space<vmem>>, vector<1x128x128xbf16>
    %31 = vector.shape_cast %30 : vector<1x128x128xbf16> to vector<128x128xbf16>
    %cst_27 = arith.constant dense<0.000000e+00> : vector<16x128xf32>
    %32 = tpu.matmul %29, %31, %cst_27 {dimension_numbers = #tpu.dot_dimension_numbers<[1], [0], [0], [1], [0, 0, 1, 1], [], []>} : vector<16x128xbf16>, vector<128x128xbf16>, vector<16x128xf32> -> vector<16x128xf32>
    %33 = arith.addf %28, %32 : vector<16x128xf32>
    %c1_28 = arith.constant 1 : index
    %c0_29 = arith.constant 0 : index
    %34 = vector.load %arg6[%c1_28, %c0_29] : memref<18x128xbf16, #tpu.memory_space<vmem>>, vector<16x128xbf16>
    %c1_30 = arith.constant 1 : index
    %c0_31 = arith.constant 0 : index
    %c0_32 = arith.constant 0 : index
    %35 = vector.load %arg3[%c1_30, %c0_31, %c0_32] : memref<3x128x128xbf16, #tpu.memory_space<vmem>>, vector<1x128x128xbf16>
    %36 = vector.shape_cast %35 : vector<1x128x128xbf16> to vector<128x128xbf16>
    %cst_33 = arith.constant dense<0.000000e+00> : vector<16x128xf32>
    %37 = tpu.matmul %34, %36, %cst_33 {dimension_numbers = #tpu.dot_dimension_numbers<[1], [0], [0], [1], [0, 0, 1, 1], [], []>} : vector<16x128xbf16>, vector<128x128xbf16>, vector<16x128xf32> -> vector<16x128xf32>
    %38 = arith.addf %33, %37 : vector<16x128xf32>
    %c2_34 = arith.constant 2 : index
    %c0_35 = arith.constant 0 : index
    %39 = vector.load %arg6[%c2_34, %c0_35] : memref<18x128xbf16, #tpu.memory_space<vmem>>, vector<16x128xbf16>
    %c2_36 = arith.constant 2 : index
    %c0_37 = arith.constant 0 : index
    %c0_38 = arith.constant 0 : index
    %40 = vector.load %arg3[%c2_36, %c0_37, %c0_38] : memref<3x128x128xbf16, #tpu.memory_space<vmem>>, vector<1x128x128xbf16>
    %41 = vector.shape_cast %40 : vector<1x128x128xbf16> to vector<128x128xbf16>
    %cst_39 = arith.constant dense<0.000000e+00> : vector<16x128xf32>
    %42 = tpu.matmul %39, %41, %cst_39 {dimension_numbers = #tpu.dot_dimension_numbers<[1], [0], [0], [1], [0, 0, 1, 1], [], []>} : vector<16x128xbf16>, vector<128x128xbf16>, vector<16x128xf32> -> vector<16x128xf32>
    %43 = arith.addf %38, %42 : vector<16x128xf32>
    %c1_40 = arith.constant 1 : index
    %c0_41 = arith.constant 0 : index
    %44 = vector.load %arg4[%c1_40, %c0_41] : memref<2x128xf32, #tpu.memory_space<vmem>>, vector<1x128xf32>
    %45 = vector.broadcast %44 : vector<1x128xf32> to vector<16x128xf32>
    %46 = arith.addf %43, %45 : vector<16x128xf32>
    %cst_42 = arith.constant 0.000000e+00 : f32
    %47 = vector.broadcast %cst_42 : f32 to vector<16x128xf32>
    %48 = arith.maximumf %46, %47 : vector<16x128xf32>
    %c0_43 = arith.constant 0 : index
    %c0_44 = arith.constant 0 : index
    %c0_45 = arith.constant 0 : index
    %49 = vector.load %arg5[%c0_43, %c0_44, %c0_45] : memref<2x16x128xf32, #tpu.memory_space<vmem>>, vector<1x16x128xf32>
    %50 = vector.shape_cast %49 : vector<1x16x128xf32> to vector<16x128xf32>
    %51 = vector.shape_cast %48 : vector<16x128xf32> to vector<1x16x128xf32>
    tpu.vector_store %arg5[%c0_43, %c0_44, %c0_45], %51 {strides = array<i32>} : memref<2x16x128xf32, #tpu.memory_space<vmem>>, vector<1x16x128xf32>,
    %c1_46 = arith.constant 1 : index
    %c0_47 = arith.constant 0 : index
    %c0_48 = arith.constant 0 : index
    %52 = vector.load %arg1[%c1_46, %c0_47, %c0_48] : memref<2x18x64xbf16, #tpu.memory_space<vmem>>, vector<1x18x64xbf16>
    %53 = vector.shape_cast %52 : vector<1x18x64xbf16> to vector<18x64xbf16>
    %cst_49 = arith.constant 0.000000e+00 : f32
    %54 = vector.broadcast %cst_49 : f32 to vector<16x128xf32>
    %55 = vector.extract_strided_slice %53 {offsets = [0, 0], sizes = [16, 64], strides = [1, 1]} : vector<18x64xbf16> to vector<16x64xbf16>
    %c0_50 = arith.constant 0 : index
    %c0_51 = arith.constant 0 : index
    %c0_52 = arith.constant 0 : index
    %56 = vector.load %arg2[%c0_50, %c0_51, %c0_52] : memref<3x64x128xbf16, #tpu.memory_space<vmem>>, vector<1x64x128xbf16>
    %57 = vector.shape_cast %56 : vector<1x64x128xbf16> to vector<64x128xbf16>
    %cst_53 = arith.constant dense<0.000000e+00> : vector<16x128xf32>
    %58 = tpu.matmul %55, %57, %cst_53 {dimension_numbers = #tpu.dot_dimension_numbers<[1], [0], [0], [1], [0, 0, 1, 1], [], []>} : vector<16x64xbf16>, vector<64x128xbf16>, vector<16x128xf32> -> vector<16x128xf32>
    %59 = arith.addf %54, %58 : vector<16x128xf32>
    %60 = vector.extract_strided_slice %53 {offsets = [1, 0], sizes = [16, 64], strides = [1, 1]} : vector<18x64xbf16> to vector<16x64xbf16>
    %c1_54 = arith.constant 1 : index
    %c0_55 = arith.constant 0 : index
    %c0_56 = arith.constant 0 : index
    %61 = vector.load %arg2[%c1_54, %c0_55, %c0_56] : memref<3x64x128xbf16, #tpu.memory_space<vmem>>, vector<1x64x128xbf16>
    %62 = vector.shape_cast %61 : vector<1x64x128xbf16> to vector<64x128xbf16>
    %cst_57 = arith.constant dense<0.000000e+00> : vector<16x128xf32>
    %63 = tpu.matmul %60, %62, %cst_57 {dimension_numbers = #tpu.dot_dimension_numbers<[1], [0], [0], [1], [0, 0, 1, 1], [], []>} : vector<16x64xbf16>, vector<64x128xbf16>, vector<16x128xf32> -> vector<16x128xf32>
    %64 = arith.addf %59, %63 : vector<16x128xf32>
    %65 = vector.extract_strided_slice %53 {offsets = [2, 0], sizes = [16, 64], strides = [1, 1]} : vector<18x64xbf16> to vector<16x64xbf16>
    %c2_58 = arith.constant 2 : index
    %c0_59 = arith.constant 0 : index
    %c0_60 = arith.constant 0 : index
    %66 = vector.load %arg2[%c2_58, %c0_59, %c0_60] : memref<3x64x128xbf16, #tpu.memory_space<vmem>>, vector<1x64x128xbf16>
    %67 = vector.shape_cast %66 : vector<1x64x128xbf16> to vector<64x128xbf16>
    %cst_61 = arith.constant dense<0.000000e+00> : vector<16x128xf32>
    %68 = tpu.matmul %65, %67, %cst_61 {dimension_numbers = #tpu.dot_dimension_numbers<[1], [0], [0], [1], [0, 0, 1, 1], [], []>} : vector<16x64xbf16>, vector<64x128xbf16>, vector<16x128xf32> -> vector<16x128xf32>
    %69 = arith.addf %64, %68 : vector<16x128xf32>
    %c0_62 = arith.constant 0 : index
    %c0_63 = arith.constant 0 : index
    %70 = vector.load %arg4[%c0_62, %c0_63] : memref<2x128xf32, #tpu.memory_space<vmem>>, vector<1x128xf32>
    %71 = vector.broadcast %70 : vector<1x128xf32> to vector<16x128xf32>
    %72 = arith.addf %69, %71 : vector<16x128xf32>
    %cst_64 = arith.constant 0.000000e+00 : f32
    %73 = vector.broadcast %cst_64 : f32 to vector<16x128xf32>
    %74 = arith.maximumf %72, %73 : vector<16x128xf32>
    %75 = arith.truncf %74 : vector<16x128xf32> to vector<16x128xbf16>
    %c1_65 = arith.constant 1 : index
    %c0_66 = arith.constant 0 : index
    %76 = vector.load %arg6[%c1_65, %c0_66] : memref<18x128xbf16, #tpu.memory_space<vmem>>, vector<16x128xbf16>
    tpu.vector_store %arg6[%c1_65, %c0_66], %75 {strides = array<i32>} : memref<18x128xbf16, #tpu.memory_space<vmem>>, vector<16x128xbf16>,
    %cst_67 = arith.constant 0.000000e+00 : f32
    %77 = vector.broadcast %cst_67 : f32 to vector<16x128xf32>
    %c0_68 = arith.constant 0 : index
    %c0_69 = arith.constant 0 : index
    %78 = vector.load %arg6[%c0_68, %c0_69] : memref<18x128xbf16, #tpu.memory_space<vmem>>, vector<16x128xbf16>
    %c0_70 = arith.constant 0 : index
    %c0_71 = arith.constant 0 : index
    %c0_72 = arith.constant 0 : index
    %79 = vector.load %arg3[%c0_70, %c0_71, %c0_72] : memref<3x128x128xbf16, #tpu.memory_space<vmem>>, vector<1x128x128xbf16>
    %80 = vector.shape_cast %79 : vector<1x128x128xbf16> to vector<128x128xbf16>
    %cst_73 = arith.constant dense<0.000000e+00> : vector<16x128xf32>
    %81 = tpu.matmul %78, %80, %cst_73 {dimension_numbers = #tpu.dot_dimension_numbers<[1], [0], [0], [1], [0, 0, 1, 1], [], []>} : vector<16x128xbf16>, vector<128x128xbf16>, vector<16x128xf32> -> vector<16x128xf32>
    %82 = arith.addf %77, %81 : vector<16x128xf32>
    %c1_74 = arith.constant 1 : index
    %c0_75 = arith.constant 0 : index
    %83 = vector.load %arg6[%c1_74, %c0_75] : memref<18x128xbf16, #tpu.memory_space<vmem>>, vector<16x128xbf16>
    %c1_76 = arith.constant 1 : index
    %c0_77 = arith.constant 0 : index
    %c0_78 = arith.constant 0 : index
    %84 = vector.load %arg3[%c1_76, %c0_77, %c0_78] : memref<3x128x128xbf16, #tpu.memory_space<vmem>>, vector<1x128x128xbf16>
    %85 = vector.shape_cast %84 : vector<1x128x128xbf16> to vector<128x128xbf16>
    %cst_79 = arith.constant dense<0.000000e+00> : vector<16x128xf32>
    %86 = tpu.matmul %83, %85, %cst_79 {dimension_numbers = #tpu.dot_dimension_numbers<[1], [0], [0], [1], [0, 0, 1, 1], [], []>} : vector<16x128xbf16>, vector<128x128xbf16>, vector<16x128xf32> -> vector<16x128xf32>
    %87 = arith.addf %82, %86 : vector<16x128xf32>
    %c2_80 = arith.constant 2 : index
    %c0_81 = arith.constant 0 : index
    %88 = vector.load %arg6[%c2_80, %c0_81] : memref<18x128xbf16, #tpu.memory_space<vmem>>, vector<16x128xbf16>
    %c2_82 = arith.constant 2 : index
    %c0_83 = arith.constant 0 : index
    %c0_84 = arith.constant 0 : index
    %89 = vector.load %arg3[%c2_82, %c0_83, %c0_84] : memref<3x128x128xbf16, #tpu.memory_space<vmem>>, vector<1x128x128xbf16>
    %90 = vector.shape_cast %89 : vector<1x128x128xbf16> to vector<128x128xbf16>
    %cst_85 = arith.constant dense<0.000000e+00> : vector<16x128xf32>
    %91 = tpu.matmul %88, %90, %cst_85 {dimension_numbers = #tpu.dot_dimension_numbers<[1], [0], [0], [1], [0, 0, 1, 1], [], []>} : vector<16x128xbf16>, vector<128x128xbf16>, vector<16x128xf32> -> vector<16x128xf32>
    %92 = arith.addf %87, %91 : vector<16x128xf32>
    %c1_86 = arith.constant 1 : index
    %c0_87 = arith.constant 0 : index
    %93 = vector.load %arg4[%c1_86, %c0_87] : memref<2x128xf32, #tpu.memory_space<vmem>>, vector<1x128xf32>
    %94 = vector.broadcast %93 : vector<1x128xf32> to vector<16x128xf32>
    %95 = arith.addf %92, %94 : vector<16x128xf32>
    %cst_88 = arith.constant 0.000000e+00 : f32
    %96 = vector.broadcast %cst_88 : f32 to vector<16x128xf32>
    %97 = arith.maximumf %95, %96 : vector<16x128xf32>
    %c1_89 = arith.constant 1 : index
    %c0_90 = arith.constant 0 : index
    %c0_91 = arith.constant 0 : index
    %98 = vector.load %arg5[%c1_89, %c0_90, %c0_91] : memref<2x16x128xf32, #tpu.memory_space<vmem>>, vector<1x16x128xf32>
    %99 = vector.shape_cast %98 : vector<1x16x128xf32> to vector<16x128xf32>
    %100 = vector.shape_cast %97 : vector<16x128xf32> to vector<1x16x128xf32>
    tpu.vector_store %arg5[%c1_89, %c0_90, %c0_91], %100 {strides = array<i32>} : memref<2x16x128xf32, #tpu.memory_space<vmem>>, vector<1x16x128xf32>,
    return
  }
  func.func @transform_0(%arg0: i32) -> (i32, i32, i32) {
    %c0_i32 = arith.constant 0 : i32
    %c0_i32_0 = arith.constant 0 : i32
    %c0_i32_1 = arith.constant 0 : i32
    return %arg0, %c0_i32, %c0_i32_0 : i32, i32, i32
  }
  func.func @transform_1(%arg0: i32) -> (i32, i32, i32) {
    %c0_i32 = arith.constant 0 : i32
    %c0_i32_0 = arith.constant 0 : i32
    %c0_i32_1 = arith.constant 0 : i32
    %c0_i32_2 = arith.constant 0 : i32
    return %c0_i32, %c0_i32_0, %c0_i32_1 : i32, i32, i32
  }
  func.func @transform_2(%arg0: i32) -> (i32, i32, i32) {
    %c0_i32 = arith.constant 0 : i32
    %c0_i32_0 = arith.constant 0 : i32
    %c0_i32_1 = arith.constant 0 : i32
    %c0_i32_2 = arith.constant 0 : i32
    return %c0_i32, %c0_i32_0, %c0_i32_1 : i32, i32, i32
  }
  func.func @transform_3(%arg0: i32) -> (i32, i32) {
    %c0_i32 = arith.constant 0 : i32
    %c0_i32_0 = arith.constant 0 : i32
    %c0_i32_1 = arith.constant 0 : i32
    return %c0_i32, %c0_i32_0 : i32, i32
  }
  func.func @transform_4(%arg0: i32) -> (i32, i32, i32) {
    %c0_i32 = arith.constant 0 : i32
    %c0_i32_0 = arith.constant 0 : i32
    %c0_i32_1 = arith.constant 0 : i32
    return %arg0, %c0_i32, %c0_i32_0 : i32, i32, i32
  }
}

</mosaic_0001>

<llo_original>
// kernel: tile.13
$region0: #{tile.13}
  #allocation0 [shape = 's32[1]{0}', space=sflag, size = 0x4, scoped, tag = 'scoped memory for tile.13']
  %s0 = inlined_call_operand.vmem [shape: f32[8], index: 0, kind: input, shape index: {}]
  %s1 = inlined_call_operand.vmem [shape: f32[16,8], index: 1, kind: output, shape index: {}]
  // Predicated region
  $region2: #{tile.13} parent=0 // pred_check
    _
  $region3: #{tile.13} parent=0 // pred_check_branch
    %3 = sbr.rel (0) target = $region5
  $region4: #{tile.13} parent=0 // pred_region
    _
  $region5: #{tile.13} parent=0 // pred_fallthru
    _
  %v4 = vld [vmem:[%s0] ss:$0 sm:$0xff]
  %5 = vst [vmem:[%s1] sm:$0xff] %v4
  %s6 = scalar_lea.vmem %s1, 8
  %7 = vst [vmem:[%s6] sm:$0xff] %v4

// kernel: b_pure_sparse_backbone_col_forward.1
$region0: #{b_pure_sparse_backbone_col_forward.1}
  #allocation0 [shape = 'u32[]', space=smem, size = 0x4, offset = 0x4, fixed_abs, tag = 'smem constant byte address 0x4 - core index']
  #allocation1 [shape = 'u32[144,128]{1,0:T(1,128)}', space=vmem, size = 0x12000, scoped, tag = 'internal scratch']
  #allocation2 [shape = 'bf16[18,128]{1,0:T(8,128)(2,1)}', space=vmem, size = 0x1800, scoped, tag = 'scratch operand']
  %s0 = inlined_call_operand.vmem [shape: bf16[2,18,64], index: 0, kind: input, shape index: {}]
  %s1 = inlined_call_operand.vmem [shape: bf16[3,64,128], index: 1, kind: input, shape index: {}]
  %s2 = inlined_call_operand.vmem [shape: bf16[3,128,128], index: 2, kind: input, shape index: {}]
  %s3 = inlined_call_operand.vmem [shape: f32[2,128], index: 3, kind: input, shape index: {}]
  %s4 = inlined_call_operand.vmem [shape: f32[2,16,128], index: 4, kind: output, shape index: {}]
  %s5 = sld [smem:[#allocation0]]
  $region26: #{b_pure_sparse_backbone_col_forward.1} parent=0
    _
  %s7 = ssub.s32 1, %s5
  %s8 = scalar_select 0, %s7, %s5
  // Predicated region
  $region2: #{b_pure_sparse_backbone_col_forward.1} parent=0 // pred_check
    _
  $region3: #{b_pure_sparse_backbone_col_forward.1} parent=0 // pred_check_branch
    %10 = sbr.rel (0) target = $region5
  $region4: #{b_pure_sparse_backbone_col_forward.1} parent=0 // pred_region
    _
  $region5: #{b_pure_sparse_backbone_col_forward.1} parent=0 // pred_fallthru
    _
  // Predicated region
  $region6: #{b_pure_sparse_backbone_col_forward.1} parent=0 // pred_check
    _
  $region7: #{b_pure_sparse_backbone_col_forward.1} parent=0 // pred_check_branch
    %12 = sbr.rel (0) target = $region9
  $region8: #{b_pure_sparse_backbone_col_forward.1} parent=0 // pred_region
    _
  $region9: #{b_pure_sparse_backbone_col_forward.1} parent=0 // pred_fallthru
    _
  // Predicated region
  $region10: #{b_pure_sparse_backbone_col_forward.1} parent=0 // pred_check
    _
  $region11: #{b_pure_sparse_backbone_col_forward.1} parent=0 // pred_check_branch
    %14 = sbr.rel (0) target = $region13
  $region12: #{b_pure_sparse_backbone_col_forward.1} parent=0 // pred_region
    _
  $region13: #{b_pure_sparse_backbone_col_forward.1} parent=0 // pred_fallthru
    _
  // Predicated region
  $region14: #{b_pure_sparse_backbone_col_forward.1} parent=0 // pred_check
    _
  $region15: #{b_pure_sparse_backbone_col_forward.1} parent=0 // pred_check_branch
    %16 = sbr.rel (0) target = $region17
  $region16: #{b_pure_sparse_backbone_col_forward.1} parent=0 // pred_region
    _
  $region17: #{b_pure_sparse_backbone_col_forward.1} parent=0 // pred_fallthru
    _
  %vm18 = vcmask 1040384
  %vm19 = vsmask.f32 256
  %vm20 = vmand %vm18, %vm19
  %v21 = vld [vmem:[#allocation2] sm:$0x1]
  %v22 = vsel %vm20, 0, %v21
  %23 = vst [vmem:[#allocation2] sm:$0x1] %v22
  %vm24 = vsmask.f32 7938
  %vm25 = vmand %vm18, %vm24
  %v26 = vld [vmem:[#allocation2 + $0x8] sm:$0x1]
  %v27 = vsel %vm25, 0, %v26
  %28 = vst [vmem:[#allocation2 + $0x8] sm:$0x1] %v27
  %v29 = vld [vmem:[%s0] sm:$0xf]
  %v30 = vld [vmem:[%s0 + $0x4] sm:$0xf]
  %v31 = vld [vmem:[%s0 + $0x8] sm:$0x1]
  %v32 = vld [vmem:[%s1] sm:$0xf]
  %v33 = vld [vmem:[%s1 + $0x4] sm:$0xf]
  %v34 = vld [vmem:[%s1 + $0x8] sm:$0xf]
  %v35 = vld [vmem:[%s1 + $0xc] sm:$0xf]
  %v36 = vld [vmem:[%s1 + $0x10] sm:$0xf]
  %v37 = vld [vmem:[%s1 + $0x14] sm:$0xf]
  %v38 = vld [vmem:[%s1 + $0x18] sm:$0xf]
  %v39 = vld [vmem:[%s1 + $0x1c] sm:$0xf]
  %s40 = scalar_lea.vmem %s1, 32
  %v41 = vld [vmem:[%s40] sm:$0xf]
  %v42 = vld [vmem:[%s40 + $0x4] sm:$0xf]
  %v43 = vld [vmem:[%s40 + $0x8] sm:$0xf]
  %v44 = vld [vmem:[%s40 + $0xc] sm:$0xf]
  %v45 = vld [vmem:[%s40 + $0x10] sm:$0xf]
  %v46 = vld [vmem:[%s40 + $0x14] sm:$0xf]
  %v47 = vld [vmem:[%s40 + $0x18] sm:$0xf]
  %v48 = vld [vmem:[%s40 + $0x1c] sm:$0xf]
  %v52 = vunpack.c.l.b16 %v29
  %v53 = vunpack.c.l.b16 %v30
  %v54 = vunpack.c.l.b16 %v31
  %v55 = vpack.c.b16 %v53, %v52
  %v56 = vpack.c.b16 %v54, %v54
  %vm57 = vsmask.f32 7424
  %v59 = vshrl.u32 %v55, 16
  %v61 = vshll.u32 %v55, 16
  %v63 = vrot.slane %v61, 1
  %v64 = vor.u32 %v59, %v63
  %v66 = vshll.u32 %v56, 16
  %v68 = vrot.slane %v66, 1
  %v69 = vsel %vm57, %v64, %v68
  %v78 = vunpack.c.l.b16 %v41
  %v79 = vunpack.c.l.b16 %v42
  %v80 = vunpack.c.l.b16 %v43
  %v81 = vunpack.c.l.b16 %v44
  %v82 = vunpack.c.l.b16 %v45
  %v83 = vunpack.c.l.b16 %v46
  %v84 = vunpack.c.l.b16 %v47
  %v85 = vunpack.c.l.b16 %v48
  %v86 = vpack.c.b16 %v79, %v78
  %v87 = vpack.c.b16 %v81, %v80
  %v88 = vpack.c.b16 %v83, %v82
  %v89 = vpack.c.b16 %v85, %v84
  %vm94 = vcmask 523264
  %v96 = vsel %vm94, %v69, 0
  %98 = vmatprep.subr.bf16.mxu0 0
  %99 = vmatpush1.bf16.msra.mxu0 %v86
  %100 = vmatprep.subr.bf16.mxu0 0
  %101 = vmatpush1.bf16.msra.mxu0 %v87
  %102 = vmatprep.subr.bf16.mxu0 0
  %103 = vmatpush1.bf16.msra.mxu0 %v88
  %104 = vmatprep.subr.bf16.mxu0 0
  %105 = vmatpush1.bf16.msra.mxu0 %v89
  %106 = vmatprep.subr.bf16.mxu0 0
  %107 = vmatpush1.bf16.msra.mxu0 0
  %108 = vmatprep.subr.bf16.mxu0 0
  %109 = vmatpush1.bf16.msra.mxu0 0
  %110 = vmatprep.subr.bf16.mxu0 0
  %111 = vmatpush1.bf16.msra.mxu0 0
  %112 = vmatprep.subr.bf16.mxu0 0
  %113 = vmatpush1.bf16.msra.mxu0 0
  %114 = vmatprep.subr.bf16.mxu0 0
  %115 = vmatpush1.bf16.msra.mxu0 0
  %116 = vmatprep.subr.bf16.mxu0 0
  %117 = vmatpush1.bf16.msra.mxu0 0
  %118 = vmatprep.subr.bf16.mxu0 0
  %119 = vmatpush1.bf16.msra.mxu0 0
  %120 = vmatprep.subr.bf16.mxu0 0
  %121 = vmatpush1.bf16.msra.mxu0 0
  %122 = vmatprep.subr.bf16.mxu0 0
  %123 = vmatpush1.bf16.msra.mxu0 0
  %124 = vmatprep.subr.bf16.mxu0 0
  %125 = vmatpush1.bf16.msra.mxu0 0
  %126 = vmatprep.subr.bf16.mxu0 0
  %127 = vmatpush1.bf16.msra.mxu0 0
  %128 = vmatprep.subr.bf16.mxu0 0
  %129 = vmatpush1.bf16.msra.mxu0 0
  %130 = vmatprep.mubr.bf16.mxu0 0
  %131 = vmatmul.mubr.bf16.gmra.mrb[0].mxu0 %v96
  %v132 = vpop.f32.mrb[0].mxu0
  %v133 = vadd.f32 0.0, %v132
  %v134 = vpop.f32.mrb[0].mxu0
  %v135 = vpop.f32.mrb[0].mxu0
  %v136 = vadd.f32 0.0, %v135
  %v137 = vpop.f32.mrb[0].mxu0
  %138 = vdwg.mxu0
  %v147 = vunpack.c.l.b16 %v32
  %v148 = vunpack.c.l.b16 %v33
  %v149 = vunpack.c.l.b16 %v34
  %v150 = vunpack.c.l.b16 %v35
  %v151 = vunpack.c.l.b16 %v36
  %v152 = vunpack.c.l.b16 %v37
  %v153 = vunpack.c.l.b16 %v38
  %v154 = vunpack.c.l.b16 %v39
  %v155 = vpack.c.b16 %v148, %v147
  %v156 = vpack.c.b16 %v150, %v149
  %v157 = vpack.c.b16 %v152, %v151
  %v158 = vpack.c.b16 %v154, %v153
  %v163 = vsel %vm94, %v55, 0
  %165 = vmatprep.subr.bf16.mxu0 0
  %166 = vmatpush1.bf16.msra.mxu0 %v155
  %167 = vmatprep.subr.bf16.mxu0 0
  %168 = vmatpush1.bf16.msra.mxu0 %v156
  %169 = vmatprep.subr.bf16.mxu0 0
  %170 = vmatpush1.bf16.msra.mxu0 %v157
  %171 = vmatprep.subr.bf16.mxu0 0
  %172 = vmatpush1.bf16.msra.mxu0 %v158
  %173 = vmatprep.subr.bf16.mxu0 0
  %174 = vmatpush1.bf16.msra.mxu0 0
  %175 = vmatprep.subr.bf16.mxu0 0
  %176 = vmatpush1.bf16.msra.mxu0 0
  %177 = vmatprep.subr.bf16.mxu0 0
  %178 = vmatpush1.bf16.msra.mxu0 0
  %179 = vmatprep.subr.bf16.mxu0 0
  %180 = vmatpush1.bf16.msra.mxu0 0
  %181 = vmatprep.subr.bf16.mxu0 0
  %182 = vmatpush1.bf16.msra.mxu0 0
  %183 = vmatprep.subr.bf16.mxu0 0
  %184 = vmatpush1.bf16.msra.mxu0 0
  %185 = vmatprep.subr.bf16.mxu0 0
  %186 = vmatpush1.bf16.msra.mxu0 0
  %187 = vmatprep.subr.bf16.mxu0 0
  %188 = vmatpush1.bf16.msra.mxu0 0
  %189 = vmatprep.subr.bf16.mxu0 0
  %190 = vmatpush1.bf16.msra.mxu0 0
  %191 = vmatprep.subr.bf16.mxu0 0
  %192 = vmatpush1.bf16.msra.mxu0 0
  %193 = vmatprep.subr.bf16.mxu0 0
  %194 = vmatpush1.bf16.msra.mxu0 0
  %195 = vmatprep.subr.bf16.mxu0 0
  %196 = vmatpush1.bf16.msra.mxu0 0
  %197 = vmatprep.mubr.bf16.mxu0 0
  %198 = vmatmul.mubr.bf16.gmra.mrb[0].mxu0 %v163
  %v199 = vpop.f32.mrb[0].mxu0
  %v200 = vadd.f32 %v133, %v199
  %v201 = vpop.f32.mrb[0].mxu0
  %v202 = vpop.f32.mrb[0].mxu0
  %v203 = vadd.f32 %v136, %v202
  %v204 = vpop.f32.mrb[0].mxu0
  %205 = vdwg.mxu0
  %s206 = scalar_lea.vmem %s1, 64
  %v207 = vld [vmem:[%s206] sm:$0xf]
  %v208 = vld [vmem:[%s206 + $0x4] sm:$0xf]
  %v209 = vld [vmem:[%s206 + $0x8] sm:$0xf]
  %v210 = vld [vmem:[%s206 + $0xc] sm:$0xf]
  %v211 = vld [vmem:[%s206 + $0x10] sm:$0xf]
  %v212 = vld [vmem:[%s206 + $0x14] sm:$0xf]
  %v213 = vld [vmem:[%s206 + $0x18] sm:$0xf]
  %v214 = vld [vmem:[%s206 + $0x1c] sm:$0xf]
  %vm215 = vcmask 1046528
  %v216 = vrot.slane %v55, 1
  %v217 = vrot.slane %v56, 1
  %v218 = vsel %vm215, %v216, %v217
  %v227 = vunpack.c.l.b16 %v207
  %v228 = vunpack.c.l.b16 %v208
  %v229 = vunpack.c.l.b16 %v209
  %v230 = vunpack.c.l.b16 %v210
  %v231 = vunpack.c.l.b16 %v211
  %v232 = vunpack.c.l.b16 %v212
  %v233 = vunpack.c.l.b16 %v213
  %v234 = vunpack.c.l.b16 %v214
  %v235 = vpack.c.b16 %v228, %v227
  %v236 = vpack.c.b16 %v230, %v229
  %v237 = vpack.c.b16 %v232, %v231
  %v238 = vpack.c.b16 %v234, %v233
  %v244 = vsel %vm94, %v218, 0
  %246 = vmatprep.subr.bf16.mxu0 0
  %247 = vmatpush1.bf16.msra.mxu0 %v235
  %248 = vmatprep.subr.bf16.mxu0 0
  %249 = vmatpush1.bf16.msra.mxu0 %v236
  %250 = vmatprep.subr.bf16.mxu0 0
  %251 = vmatpush1.bf16.msra.mxu0 %v237
  %252 = vmatprep.subr.bf16.mxu0 0
  %253 = vmatpush1.bf16.msra.mxu0 %v238
  %254 = vmatprep.subr.bf16.mxu0 0
  %255 = vmatpush1.bf16.msra.mxu0 0
  %256 = vmatprep.subr.bf16.mxu0 0
  %257 = vmatpush1.bf16.msra.mxu0 0
  %258 = vmatprep.subr.bf16.mxu0 0
  %259 = vmatpush1.bf16.msra.mxu0 0
  %260 = vmatprep.subr.bf16.mxu0 0
  %261 = vmatpush1.bf16.msra.mxu0 0
  %262 = vmatprep.subr.bf16.mxu0 0
  %263 = vmatpush1.bf16.msra.mxu0 0
  %264 = vmatprep.subr.bf16.mxu0 0
  %265 = vmatpush1.bf16.msra.mxu0 0
  %266 = vmatprep.subr.bf16.mxu0 0
  %267 = vmatpush1.bf16.msra.mxu0 0
  %268 = vmatprep.subr.bf16.mxu0 0
  %269 = vmatpush1.bf16.msra.mxu0 0
  %270 = vmatprep.subr.bf16.mxu0 0
  %271 = vmatpush1.bf16.msra.mxu0 0
  %272 = vmatprep.subr.bf16.mxu0 0
  %273 = vmatpush1.bf16.msra.mxu0 0
  %274 = vmatprep.subr.bf16.mxu0 0
  %275 = vmatpush1.bf16.msra.mxu0 0
  %276 = vmatprep.subr.bf16.mxu0 0
  %277 = vmatpush1.bf16.msra.mxu0 0
  %278 = vmatprep.mubr.bf16.mxu0 0
  %279 = vmatmul.mubr.bf16.gmra.mrb[0].mxu0 %v244
  %v280 = vpop.f32.mrb[0].mxu0
  %v281 = vadd.f32 0.0, %v280
  %v282 = vpop.f32.mrb[0].mxu0
  %v283 = vpop.f32.mrb[0].mxu0
  %v284 = vadd.f32 0.0, %v283
  %v285 = vpop.f32.mrb[0].mxu0
  %286 = vdwg.mxu0
  %v287 = vadd.f32 %v200, %v281
  %v288 = vadd.f32 %v203, %v284
  %v289 = vld [vmem:[%s3] sm:$0x1]
  %v290 = vlaneseq
  %v291 = vshrl.u32 %v290, 7
  %v292 = vsub.s32 0, %v291
  %v293 = vrot.slane %v289, %v292
  %v294 = vadd.f32 %v287, %v293
  %v295 = vadd.f32 %v288, %v293
  %v296 = vmax.f32 %v294, 0.0
  %v297 = vmax.f32 %v295, 0.0
  %v298 = vpack.c.bf16 %v297, %v296
  %v300 = vunpack.c.l.b16 %v298
  %v301 = vunpack.c.h.b16 %v298
  %v302 = vpack.c.b16 %v300, %v300
  %v303 = vpack.c.b16 %v301, %v301
  %vm304 = vsmask.f32 4368
  %vm305 = vmor %vm19, %vm304
  %v307 = vshrl.u32 %v302, 16
  %v309 = vrot.slane %v307, 7
  %v310 = vshll.u32 %v302, 16
  %v312 = vor.u32 %v309, %v310
  %v313 = vrot.slane %v309, 4
  %v315 = vshrl.u32 %v303, 16
  %v317 = vrot.slane %v315, 7
  %v318 = vshll.u32 %v303, 16
  %v320 = vor.u32 %v317, %v318
  %v321 = vsel %vm305, %v313, %v320
  %v322 = vrot.slane %v317, 4
  %vm326 = vcmask 1043456
  %vm327 = vmand %vm326, %vm24
  %v328 = vld [vmem:[#allocation2] sm:$0xf]
  %v329 = vsel %vm327, %v312, %v328
  %330 = vst [vmem:[#allocation2] sm:$0xf] %v329
  %331 = vst [vmem:[#allocation2 + $0x4] sm:$0xf] %v321
  %v332 = vld [vmem:[#allocation2 + $0x8] sm:$0x1]
  %v333 = vsel %vm20, %v322, %v332
  %334 = vst [vmem:[#allocation2 + $0x8] sm:$0x1] %v333
  %v335 = vld [vmem:[#allocation2] sm:$0xf]
  %v336 = vld [vmem:[#allocation2 + $0x4] sm:$0xf]
  %v337 = vld [vmem:[%s2] sm:$0xf]
  %v338 = vld [vmem:[%s2 + $0x4] sm:$0xf]
  %v339 = vld [vmem:[%s2 + $0x8] sm:$0xf]
  %v340 = vld [vmem:[%s2 + $0xc] sm:$0xf]
  %v341 = vld [vmem:[%s2 + $0x10] sm:$0xf]
  %v342 = vld [vmem:[%s2 + $0x14] sm:$0xf]
  %v343 = vld [vmem:[%s2 + $0x18] sm:$0xf]
  %v344 = vld [vmem:[%s2 + $0x1c] sm:$0xf]
  %v345 = vld [vmem:[%s2 + $0x20] sm:$0xf]
  %v346 = vld [vmem:[%s2 + $0x24] sm:$0xf]
  %v347 = vld [vmem:[%s2 + $0x28] sm:$0xf]
  %v348 = vld [vmem:[%s2 + $0x2c] sm:$0xf]
  %v349 = vld [vmem:[%s2 + $0x30] sm:$0xf]
  %v350 = vld [vmem:[%s2 + $0x34] sm:$0xf]
  %v351 = vld [vmem:[%s2 + $0x38] sm:$0xf]
  %v352 = vld [vmem:[%s2 + $0x3c] sm:$0xf]
  %v353 = vld [vmem:[#allocation2 + $0x8] sm:$0x1]
  %s354 = scalar_lea.vmem %s2, 64
  %v355 = vld [vmem:[%s354] sm:$0xf]
  %v356 = vld [vmem:[%s354 + $0x4] sm:$0xf]
  %v357 = vld [vmem:[%s354 + $0x8] sm:$0xf]
  %v358 = vld [vmem:[%s354 + $0xc] sm:$0xf]
  %v359 = vld [vmem:[%s354 + $0x10] sm:$0xf]
  %v360 = vld [vmem:[%s354 + $0x14] sm:$0xf]
  %v361 = vld [vmem:[%s354 + $0x18] sm:$0xf]
  %v362 = vld [vmem:[%s354 + $0x1c] sm:$0xf]
  %v363 = vld [vmem:[%s354 + $0x20] sm:$0xf]
  %v364 = vld [vmem:[%s354 + $0x24] sm:$0xf]
  %v365 = vld [vmem:[%s354 + $0x28] sm:$0xf]
  %v366 = vld [vmem:[%s354 + $0x2c] sm:$0xf]
  %v367 = vld [vmem:[%s354 + $0x30] sm:$0xf]
  %v368 = vld [vmem:[%s354 + $0x34] sm:$0xf]
  %v369 = vld [vmem:[%s354 + $0x38] sm:$0xf]
  %v370 = vld [vmem:[%s354 + $0x3c] sm:$0xf]
  %v374 = vunpack.c.l.b16 %v335
  %v375 = vunpack.c.l.b16 %v336
  %v376 = vunpack.c.l.b16 %v353
  %v377 = vpack.c.b16 %v375, %v374
  %v378 = vpack.c.b16 %v376, %v376
  %v380 = vshrl.u32 %v377, 16
  %v382 = vshll.u32 %v377, 16
  %v384 = vrot.slane %v382, 1
  %v385 = vor.u32 %v380, %v384
  %v387 = vshll.u32 %v378, 16
  %v389 = vrot.slane %v387, 1
  %v390 = vsel %vm57, %v385, %v389
  %v408 = vunpack.c.l.b16 %v355
  %v409 = vunpack.c.l.b16 %v356
  %v410 = vunpack.c.l.b16 %v357
  %v411 = vunpack.c.l.b16 %v358
  %v412 = vunpack.c.l.b16 %v359
  %v413 = vunpack.c.l.b16 %v360
  %v414 = vunpack.c.l.b16 %v361
  %v415 = vunpack.c.l.b16 %v362
  %v416 = vunpack.c.l.b16 %v363
  %v417 = vunpack.c.l.b16 %v364
  %v418 = vunpack.c.l.b16 %v365
  %v419 = vunpack.c.l.b16 %v366
  %v420 = vunpack.c.l.b16 %v367
  %v421 = vunpack.c.l.b16 %v368
  %v422 = vunpack.c.l.b16 %v369
  %v423 = vunpack.c.l.b16 %v370
  %v424 = vpack.c.b16 %v409, %v408
  %v425 = vpack.c.b16 %v411, %v410
  %v426 = vpack.c.b16 %v413, %v412
  %v427 = vpack.c.b16 %v415, %v414
  %v428 = vpack.c.b16 %v417, %v416
  %v429 = vpack.c.b16 %v419, %v418
  %v430 = vpack.c.b16 %v421, %v420
  %v431 = vpack.c.b16 %v423, %v422
  %440 = vmatprep.subr.bf16.mxu0 0
  %441 = vmatpush1.bf16.msra.mxu0 %v424
  %442 = vmatprep.subr.bf16.mxu0 0
  %443 = vmatpush1.bf16.msra.mxu0 %v425
  %444 = vmatprep.subr.bf16.mxu0 0
  %445 = vmatpush1.bf16.msra.mxu0 %v426
  %446 = vmatprep.subr.bf16.mxu0 0
  %447 = vmatpush1.bf16.msra.mxu0 %v427
  %448 = vmatprep.subr.bf16.mxu0 0
  %449 = vmatpush1.bf16.msra.mxu0 %v428
  %450 = vmatprep.subr.bf16.mxu0 0
  %451 = vmatpush1.bf16.msra.mxu0 %v429
  %452 = vmatprep.subr.bf16.mxu0 0
  %453 = vmatpush1.bf16.msra.mxu0 %v430
  %454 = vmatprep.subr.bf16.mxu0 0
  %455 = vmatpush1.bf16.msra.mxu0 %v431
  %456 = vmatprep.subr.bf16.mxu0 0
  %457 = vmatpush1.bf16.msra.mxu0 0
  %458 = vmatprep.subr.bf16.mxu0 0
  %459 = vmatpush1.bf16.msra.mxu0 0
  %460 = vmatprep.subr.bf16.mxu0 0
  %461 = vmatpush1.bf16.msra.mxu0 0
  %462 = vmatprep.subr.bf16.mxu0 0
  %463 = vmatpush1.bf16.msra.mxu0 0
  %464 = vmatprep.subr.bf16.mxu0 0
  %465 = vmatpush1.bf16.msra.mxu0 0
  %466 = vmatprep.subr.bf16.mxu0 0
  %467 = vmatpush1.bf16.msra.mxu0 0
  %468 = vmatprep.subr.bf16.mxu0 0
  %469 = vmatpush1.bf16.msra.mxu0 0
  %470 = vmatprep.subr.bf16.mxu0 0
  %471 = vmatpush1.bf16.msra.mxu0 0
  %472 = vmatprep.mubr.bf16.mxu0 0
  %473 = vmatmul.mubr.bf16.gmra.mrb[0].mxu0 %v390
  %v474 = vpop.f32.mrb[0].mxu0
  %v475 = vadd.f32 0.0, %v474
  %v476 = vpop.f32.mrb[0].mxu0
  %v477 = vpop.f32.mrb[0].mxu0
  %v478 = vadd.f32 0.0, %v477
  %v479 = vpop.f32.mrb[0].mxu0
  %480 = vdwg.mxu0
  %v498 = vunpack.c.l.b16 %v337
  %v499 = vunpack.c.l.b16 %v338
  %v500 = vunpack.c.l.b16 %v339
  %v501 = vunpack.c.l.b16 %v340
  %v502 = vunpack.c.l.b16 %v341
  %v503 = vunpack.c.l.b16 %v342
  %v504 = vunpack.c.l.b16 %v343
  %v505 = vunpack.c.l.b16 %v344
  %v506 = vunpack.c.l.b16 %v345
  %v507 = vunpack.c.l.b16 %v346
  %v508 = vunpack.c.l.b16 %v347
  %v509 = vunpack.c.l.b16 %v348
  %v510 = vunpack.c.l.b16 %v349
  %v511 = vunpack.c.l.b16 %v350
  %v512 = vunpack.c.l.b16 %v351
  %v513 = vunpack.c.l.b16 %v352
  %v514 = vpack.c.b16 %v499, %v498
  %v515 = vpack.c.b16 %v501, %v500
  %v516 = vpack.c.b16 %v503, %v502
  %v517 = vpack.c.b16 %v505, %v504
  %v518 = vpack.c.b16 %v507, %v506
  %v519 = vpack.c.b16 %v509, %v508
  %v520 = vpack.c.b16 %v511, %v510
  %v521 = vpack.c.b16 %v513, %v512
  %530 = vmatprep.subr.bf16.mxu0 0
  %531 = vmatpush1.bf16.msra.mxu0 %v514
  %532 = vmatprep.subr.bf16.mxu0 0
  %533 = vmatpush1.bf16.msra.mxu0 %v515
  %534 = vmatprep.subr.bf16.mxu0 0
  %535 = vmatpush1.bf16.msra.mxu0 %v516
  %536 = vmatprep.subr.bf16.mxu0 0
  %537 = vmatpush1.bf16.msra.mxu0 %v517
  %538 = vmatprep.subr.bf16.mxu0 0
  %539 = vmatpush1.bf16.msra.mxu0 %v518
  %540 = vmatprep.subr.bf16.mxu0 0
  %541 = vmatpush1.bf16.msra.mxu0 %v519
  %542 = vmatprep.subr.bf16.mxu0 0
  %543 = vmatpush1.bf16.msra.mxu0 %v520
  %544 = vmatprep.subr.bf16.mxu0 0
  %545 = vmatpush1.bf16.msra.mxu0 %v521
  %546 = vmatprep.subr.bf16.mxu0 0
  %547 = vmatpush1.bf16.msra.mxu0 0
  %548 = vmatprep.subr.bf16.mxu0 0
  %549 = vmatpush1.bf16.msra.mxu0 0
  %550 = vmatprep.subr.bf16.mxu0 0
  %551 = vmatpush1.bf16.msra.mxu0 0
  %552 = vmatprep.subr.bf16.mxu0 0
  %553 = vmatpush1.bf16.msra.mxu0 0
  %554 = vmatprep.subr.bf16.mxu0 0
  %555 = vmatpush1.bf16.msra.mxu0 0
  %556 = vmatprep.subr.bf16.mxu0 0
  %557 = vmatpush1.bf16.msra.mxu0 0
  %558 = vmatprep.subr.bf16.mxu0 0
  %559 = vmatpush1.bf16.msra.mxu0 0
  %560 = vmatprep.subr.bf16.mxu0 0
  %561 = vmatpush1.bf16.msra.mxu0 0
  %562 = vmatprep.mubr.bf16.mxu0 0
  %563 = vmatmul.mubr.bf16.gmra.mrb[0].mxu0 %v377
  %v564 = vpop.f32.mrb[0].mxu0
  %v565 = vadd.f32 %v475, %v564
  %v566 = vpop.f32.mrb[0].mxu0
  %v567 = vpop.f32.mrb[0].mxu0
  %v568 = vadd.f32 %v478, %v567
  %v569 = vpop.f32.mrb[0].mxu0
  %570 = vdwg.mxu0
  %v571 = vld [vmem:[#allocation2] sm:$0xe]
  %s572 = scalar_lea.vmem %s2, 128
  %v573 = vld [vmem:[%s572] sm:$0xf]
  %v574 = vld [vmem:[%s572 + $0x4] sm:$0xf]
  %v575 = vld [vmem:[%s572 + $0x8] sm:$0xf]
  %v576 = vld [vmem:[%s572 + $0xc] sm:$0xf]
  %v577 = vld [vmem:[%s572 + $0x10] sm:$0xf]
  %v578 = vld [vmem:[%s572 + $0x14] sm:$0xf]
  %v579 = vld [vmem:[%s572 + $0x18] sm:$0xf]
  %v580 = vld [vmem:[%s572 + $0x1c] sm:$0xf]
  %v581 = vld [vmem:[%s572 + $0x20] sm:$0xf]
  %v582 = vld [vmem:[%s572 + $0x24] sm:$0xf]
  %v583 = vld [vmem:[%s572 + $0x28] sm:$0xf]
  %v584 = vld [vmem:[%s572 + $0x2c] sm:$0xf]
  %v585 = vld [vmem:[%s572 + $0x30] sm:$0xf]
  %v586 = vld [vmem:[%s572 + $0x34] sm:$0xf]
  %v587 = vld [vmem:[%s572 + $0x38] sm:$0xf]
  %v588 = vld [vmem:[%s572 + $0x3c] sm:$0xf]
  %v590 = vunpack.c.l.b16 %v571
  %v591 = vpack.c.b16 %v375, %v590
  %v592 = vrot.slane %v591, 1
  %v593 = vrot.slane %v378, 1
  %v594 = vsel %vm215, %v592, %v593
  %v612 = vunpack.c.l.b16 %v573
  %v613 = vunpack.c.l.b16 %v574
  %v614 = vunpack.c.l.b16 %v575
  %v615 = vunpack.c.l.b16 %v576
  %v616 = vunpack.c.l.b16 %v577
  %v617 = vunpack.c.l.b16 %v578
  %v618 = vunpack.c.l.b16 %v579
  %v619 = vunpack.c.l.b16 %v580
  %v620 = vunpack.c.l.b16 %v581
  %v621 = vunpack.c.l.b16 %v582
  %v622 = vunpack.c.l.b16 %v583
  %v623 = vunpack.c.l.b16 %v584
  %v624 = vunpack.c.l.b16 %v585
  %v625 = vunpack.c.l.b16 %v586
  %v626 = vunpack.c.l.b16 %v587
  %v627 = vunpack.c.l.b16 %v588
  %v628 = vpack.c.b16 %v613, %v612
  %v629 = vpack.c.b16 %v615, %v614
  %v630 = vpack.c.b16 %v617, %v616
  %v631 = vpack.c.b16 %v619, %v618
  %v632 = vpack.c.b16 %v621, %v620
  %v633 = vpack.c.b16 %v623, %v622
  %v634 = vpack.c.b16 %v625, %v624
  %v635 = vpack.c.b16 %v627, %v626
  %644 = vmatprep.subr.bf16.mxu0 0
  %645 = vmatpush1.bf16.msra.mxu0 %v628
  %646 = vmatprep.subr.bf16.mxu0 0
  %647 = vmatpush1.bf16.msra.mxu0 %v629
  %648 = vmatprep.subr.bf16.mxu0 0
  %649 = vmatpush1.bf16.msra.mxu0 %v630
  %650 = vmatprep.subr.bf16.mxu0 0
  %651 = vmatpush1.bf16.msra.mxu0 %v631
  %652 = vmatprep.subr.bf16.mxu0 0
  %653 = vmatpush1.bf16.msra.mxu0 %v632
  %654 = vmatprep.subr.bf16.mxu0 0
  %655 = vmatpush1.bf16.msra.mxu0 %v633
  %656 = vmatprep.subr.bf16.mxu0 0
  %657 = vmatpush1.bf16.msra.mxu0 %v634
  %658 = vmatprep.subr.bf16.mxu0 0
  %659 = vmatpush1.bf16.msra.mxu0 %v635
  %660 = vmatprep.subr.bf16.mxu0 0
  %661 = vmatpush1.bf16.msra.mxu0 0
  %662 = vmatprep.subr.bf16.mxu0 0
  %663 = vmatpush1.bf16.msra.mxu0 0
  %664 = vmatprep.subr.bf16.mxu0 0
  %665 = vmatpush1.bf16.msra.mxu0 0
  %666 = vmatprep.subr.bf16.mxu0 0
  %667 = vmatpush1.bf16.msra.mxu0 0
  %668 = vmatprep.subr.bf16.mxu0 0
  %669 = vmatpush1.bf16.msra.mxu0 0
  %670 = vmatprep.subr.bf16.mxu0 0
  %671 = vmatpush1.bf16.msra.mxu0 0
  %672 = vmatprep.subr.bf16.mxu0 0
  %673 = vmatpush1.bf16.msra.mxu0 0
  %674 = vmatprep.subr.bf16.mxu0 0
  %675 = vmatpush1.bf16.msra.mxu0 0
  %676 = vmatprep.mubr.bf16.mxu0 0
  %677 = vmatmul.mubr.bf16.gmra.mrb[0].mxu0 %v594
  %v678 = vpop.f32.mrb[0].mxu0
  %v679 = vadd.f32 0.0, %v678
  %v680 = vpop.f32.mrb[0].mxu0
  %v681 = vpop.f32.mrb[0].mxu0
  %v682 = vadd.f32 0.0, %v681
  %v683 = vpop.f32.mrb[0].mxu0
  %684 = vdwg.mxu0
  %v685 = vadd.f32 %v565, %v679
  %v686 = vadd.f32 %v568, %v682
  %v687 = vld [vmem:[%s3 + $0x1] sm:$0x1]
  %v688 = vlaneseq
  %v689 = vshrl.u32 %v688, 7
  %v690 = vsub.s32 0, %v689
  %v691 = vrot.slane %v687, %v690
  %v692 = vadd.f32 %v685, %v691
  %v693 = vadd.f32 %v686, %v691
  %v694 = vmax.f32 %v692, 0.0
  %v695 = vmax.f32 %v693, 0.0
  %696 = vst [vmem:[%s4] sm:$0xff] %v694
  %697 = vst [vmem:[%s4 + $0x8] sm:$0xff] %v695
  %s698 = scalar_lea.vmem %s0, 12
  %v699 = vld [vmem:[%s698] sm:$0xf]
  %v700 = vld [vmem:[%s698 + $0x4] sm:$0xf]
  %v701 = vld [vmem:[%s698 + $0x8] sm:$0x1]
  %v702 = vld [vmem:[%s1] sm:$0xf]
  %v703 = vld [vmem:[%s1 + $0x4] sm:$0xf]
  %v704 = vld [vmem:[%s1 + $0x8] sm:$0xf]
  %v705 = vld [vmem:[%s1 + $0xc] sm:$0xf]
  %v706 = vld [vmem:[%s1 + $0x10] sm:$0xf]
  %v707 = vld [vmem:[%s1 + $0x14] sm:$0xf]
  %v708 = vld [vmem:[%s1 + $0x18] sm:$0xf]
  %v709 = vld [vmem:[%s1 + $0x1c] sm:$0xf]
  %v710 = vld [vmem:[%s40] sm:$0xf]
  %v711 = vld [vmem:[%s40 + $0x4] sm:$0xf]
  %v712 = vld [vmem:[%s40 + $0x8] sm:$0xf]
  %v713 = vld [vmem:[%s40 + $0xc] sm:$0xf]
  %v714 = vld [vmem:[%s40 + $0x10] sm:$0xf]
  %v715 = vld [vmem:[%s40 + $0x14] sm:$0xf]
  %v716 = vld [vmem:[%s40 + $0x18] sm:$0xf]
  %v717 = vld [vmem:[%s40 + $0x1c] sm:$0xf]
  %v721 = vunpack.c.l.b16 %v699
  %v722 = vunpack.c.l.b16 %v700
  %v723 = vunpack.c.l.b16 %v701
  %v724 = vpack.c.b16 %v722, %v721
  %v725 = vpack.c.b16 %v723, %v723
  %v727 = vshrl.u32 %v724, 16
  %v729 = vshll.u32 %v724, 16
  %v731 = vrot.slane %v729, 1
  %v732 = vor.u32 %v727, %v731
  %v734 = vshll.u32 %v725, 16
  %v736 = vrot.slane %v734, 1
  %v737 = vsel %vm57, %v732, %v736
  %v746 = vunpack.c.l.b16 %v710
  %v747 = vunpack.c.l.b16 %v711
  %v748 = vunpack.c.l.b16 %v712
  %v749 = vunpack.c.l.b16 %v713
  %v750 = vunpack.c.l.b16 %v714
  %v751 = vunpack.c.l.b16 %v715
  %v752 = vunpack.c.l.b16 %v716
  %v753 = vunpack.c.l.b16 %v717
  %v754 = vpack.c.b16 %v747, %v746
  %v755 = vpack.c.b16 %v749, %v748
  %v756 = vpack.c.b16 %v751, %v750
  %v757 = vpack.c.b16 %v753, %v752
  %v763 = vsel %vm94, %v737, 0
  %765 = vmatprep.subr.bf16.mxu0 0
  %766 = vmatpush1.bf16.msra.mxu0 %v754
  %767 = vmatprep.subr.bf16.mxu0 0
  %768 = vmatpush1.bf16.msra.mxu0 %v755
  %769 = vmatprep.subr.bf16.mxu0 0
  %770 = vmatpush1.bf16.msra.mxu0 %v756
  %771 = vmatprep.subr.bf16.mxu0 0
  %772 = vmatpush1.bf16.msra.mxu0 %v757
  %773 = vmatprep.subr.bf16.mxu0 0
  %774 = vmatpush1.bf16.msra.mxu0 0
  %775 = vmatprep.subr.bf16.mxu0 0
  %776 = vmatpush1.bf16.msra.mxu0 0
  %777 = vmatprep.subr.bf16.mxu0 0
  %778 = vmatpush1.bf16.msra.mxu0 0
  %779 = vmatprep.subr.bf16.mxu0 0
  %780 = vmatpush1.bf16.msra.mxu0 0
  %781 = vmatprep.subr.bf16.mxu0 0
  %782 = vmatpush1.bf16.msra.mxu0 0
  %783 = vmatprep.subr.bf16.mxu0 0
  %784 = vmatpush1.bf16.msra.mxu0 0
  %785 = vmatprep.subr.bf16.mxu0 0
  %786 = vmatpush1.bf16.msra.mxu0 0
  %787 = vmatprep.subr.bf16.mxu0 0
  %788 = vmatpush1.bf16.msra.mxu0 0
  %789 = vmatprep.subr.bf16.mxu0 0
  %790 = vmatpush1.bf16.msra.mxu0 0
  %791 = vmatprep.subr.bf16.mxu0 0
  %792 = vmatpush1.bf16.msra.mxu0 0
  %793 = vmatprep.subr.bf16.mxu0 0
  %794 = vmatpush1.bf16.msra.mxu0 0
  %795 = vmatprep.subr.bf16.mxu0 0
  %796 = vmatpush1.bf16.msra.mxu0 0
  %797 = vmatprep.mubr.bf16.mxu0 0
  %798 = vmatmul.mubr.bf16.gmra.mrb[0].mxu0 %v763
  %v799 = vpop.f32.mrb[0].mxu0
  %v800 = vadd.f32 0.0, %v799
  %v801 = vpop.f32.mrb[0].mxu0
  %v802 = vpop.f32.mrb[0].mxu0
  %v803 = vadd.f32 0.0, %v802
  %v804 = vpop.f32.mrb[0].mxu0
  %805 = vdwg.mxu0
  %v814 = vunpack.c.l.b16 %v702
  %v815 = vunpack.c.l.b16 %v703
  %v816 = vunpack.c.l.b16 %v704
  %v817 = vunpack.c.l.b16 %v705
  %v818 = vunpack.c.l.b16 %v706
  %v819 = vunpack.c.l.b16 %v707
  %v820 = vunpack.c.l.b16 %v708
  %v821 = vunpack.c.l.b16 %v709
  %v822 = vpack.c.b16 %v815, %v814
  %v823 = vpack.c.b16 %v817, %v816
  %v824 = vpack.c.b16 %v819, %v818
  %v825 = vpack.c.b16 %v821, %v820
  %v830 = vsel %vm94, %v724, 0
  %832 = vmatprep.subr.bf16.mxu0 0
  %833 = vmatpush1.bf16.msra.mxu0 %v822
  %834 = vmatprep.subr.bf16.mxu0 0
  %835 = vmatpush1.bf16.msra.mxu0 %v823
  %836 = vmatprep.subr.bf16.mxu0 0
  %837 = vmatpush1.bf16.msra.mxu0 %v824
  %838 = vmatprep.subr.bf16.mxu0 0
  %839 = vmatpush1.bf16.msra.mxu0 %v825
  %840 = vmatprep.subr.bf16.mxu0 0
  %841 = vmatpush1.bf16.msra.mxu0 0
  %842 = vmatprep.subr.bf16.mxu0 0
  %843 = vmatpush1.bf16.msra.mxu0 0
  %844 = vmatprep.subr.bf16.mxu0 0
  %845 = vmatpush1.bf16.msra.mxu0 0
  %846 = vmatprep.subr.bf16.mxu0 0
  %847 = vmatpush1.bf16.msra.mxu0 0
  %848 = vmatprep.subr.bf16.mxu0 0
  %849 = vmatpush1.bf16.msra.mxu0 0
  %850 = vmatprep.subr.bf16.mxu0 0
  %851 = vmatpush1.bf16.msra.mxu0 0
  %852 = vmatprep.subr.bf16.mxu0 0
  %853 = vmatpush1.bf16.msra.mxu0 0
  %854 = vmatprep.subr.bf16.mxu0 0
  %855 = vmatpush1.bf16.msra.mxu0 0
  %856 = vmatprep.subr.bf16.mxu0 0
  %857 = vmatpush1.bf16.msra.mxu0 0
  %858 = vmatprep.subr.bf16.mxu0 0
  %859 = vmatpush1.bf16.msra.mxu0 0
  %860 = vmatprep.subr.bf16.mxu0 0
  %861 = vmatpush1.bf16.msra.mxu0 0
  %862 = vmatprep.subr.bf16.mxu0 0
  %863 = vmatpush1.bf16.msra.mxu0 0
  %864 = vmatprep.mubr.bf16.mxu0 0
  %865 = vmatmul.mubr.bf16.gmra.mrb[0].mxu0 %v830
  %v866 = vpop.f32.mrb[0].mxu0
  %v867 = vadd.f32 %v800, %v866
  %v868 = vpop.f32.mrb[0].mxu0
  %v869 = vpop.f32.mrb[0].mxu0
  %v870 = vadd.f32 %v803, %v869
  %v871 = vpop.f32.mrb[0].mxu0
  %872 = vdwg.mxu0
  %v873 = vld [vmem:[%s206] sm:$0xf]
  %v874 = vld [vmem:[%s206 + $0x4] sm:$0xf]
  %v875 = vld [vmem:[%s206 + $0x8] sm:$0xf]
  %v876 = vld [vmem:[%s206 + $0xc] sm:$0xf]
  %v877 = vld [vmem:[%s206 + $0x10] sm:$0xf]
  %v878 = vld [vmem:[%s206 + $0x14] sm:$0xf]
  %v879 = vld [vmem:[%s206 + $0x18] sm:$0xf]
  %v880 = vld [vmem:[%s206 + $0x1c] sm:$0xf]
  %v881 = vrot.slane %v724, 1
  %v882 = vrot.slane %v725, 1
  %v883 = vsel %vm215, %v881, %v882
  %v892 = vunpack.c.l.b16 %v873
  %v893 = vunpack.c.l.b16 %v874
  %v894 = vunpack.c.l.b16 %v875
  %v895 = vunpack.c.l.b16 %v876
  %v896 = vunpack.c.l.b16 %v877
  %v897 = vunpack.c.l.b16 %v878
  %v898 = vunpack.c.l.b16 %v879
  %v899 = vunpack.c.l.b16 %v880
  %v900 = vpack.c.b16 %v893, %v892
  %v901 = vpack.c.b16 %v895, %v894
  %v902 = vpack.c.b16 %v897, %v896
  %v903 = vpack.c.b16 %v899, %v898
  %v909 = vsel %vm94, %v883, 0
  %911 = vmatprep.subr.bf16.mxu0 0
  %912 = vmatpush1.bf16.msra.mxu0 %v900
  %913 = vmatprep.subr.bf16.mxu0 0
  %914 = vmatpush1.bf16.msra.mxu0 %v901
  %915 = vmatprep.subr.bf16.mxu0 0
  %916 = vmatpush1.bf16.msra.mxu0 %v902
  %917 = vmatprep.subr.bf16.mxu0 0
  %918 = vmatpush1.bf16.msra.mxu0 %v903
  %919 = vmatprep.subr.bf16.mxu0 0
  %920 = vmatpush1.bf16.msra.mxu0 0
  %921 = vmatprep.subr.bf16.mxu0 0
  %922 = vmatpush1.bf16.msra.mxu0 0
  %923 = vmatprep.subr.bf16.mxu0 0
  %924 = vmatpush1.bf16.msra.mxu0 0
  %925 = vmatprep.subr.bf16.mxu0 0
  %926 = vmatpush1.bf16.msra.mxu0 0
  %927 = vmatprep.subr.bf16.mxu0 0
  %928 = vmatpush1.bf16.msra.mxu0 0
  %929 = vmatprep.subr.bf16.mxu0 0
  %930 = vmatpush1.bf16.msra.mxu0 0
  %931 = vmatprep.subr.bf16.mxu0 0
  %932 = vmatpush1.bf16.msra.mxu0 0
  %933 = vmatprep.subr.bf16.mxu0 0
  %934 = vmatpush1.bf16.msra.mxu0 0
  %935 = vmatprep.subr.bf16.mxu0 0
  %936 = vmatpush1.bf16.msra.mxu0 0
  %937 = vmatprep.subr.bf16.mxu0 0
  %938 = vmatpush1.bf16.msra.mxu0 0
  %939 = vmatprep.subr.bf16.mxu0 0
  %940 = vmatpush1.bf16.msra.mxu0 0
  %941 = vmatprep.subr.bf16.mxu0 0
  %942 = vmatpush1.bf16.msra.mxu0 0
  %943 = vmatprep.mubr.bf16.mxu0 0
  %944 = vmatmul.mubr.bf16.gmra.mrb[0].mxu0 %v909
  %v945 = vpop.f32.mrb[0].mxu0
  %v946 = vadd.f32 0.0, %v945
  %v947 = vpop.f32.mrb[0].mxu0
  %v948 = vpop.f32.mrb[0].mxu0
  %v949 = vadd.f32 0.0, %v948
  %v950 = vpop.f32.mrb[0].mxu0
  %951 = vdwg.mxu0
  %v952 = vadd.f32 %v867, %v946
  %v953 = vadd.f32 %v870, %v949
  %v954 = vld [vmem:[%s3] sm:$0x1]
  %v955 = vlaneseq
  %v956 = vshrl.u32 %v955, 7
  %v957 = vsub.s32 0, %v956
  %v958 = vrot.slane %v954, %v957
  %v959 = vadd.f32 %v952, %v958
  %v960 = vadd.f32 %v953, %v958
  %v961 = vmax.f32 %v959, 0.0
  %v962 = vmax.f32 %v960, 0.0
  %v963 = vpack.c.bf16 %v962, %v961
  %v965 = vunpack.c.l.b16 %v963
  %v966 = vunpack.c.h.b16 %v963
  %v967 = vpack.c.b16 %v965, %v965
  %v968 = vpack.c.b16 %v966, %v966
  %v970 = vshrl.u32 %v967, 16
  %v972 = vrot.slane %v970, 7
  %v973 = vshll.u32 %v967, 16
  %v975 = vor.u32 %v972, %v973
  %v976 = vrot.slane %v972, 4
  %v978 = vshrl.u32 %v968, 16
  %v980 = vrot.slane %v978, 7
  %v981 = vshll.u32 %v968, 16
  %v983 = vor.u32 %v980, %v981
  %v984 = vsel %vm305, %v976, %v983
  %v985 = vrot.slane %v980, 4
  %v989 = vld [vmem:[#allocation2] sm:$0xf]
  %v990 = vsel %vm327, %v975, %v989
  %991 = vst [vmem:[#allocation2] sm:$0xf] %v990
  %992 = vst [vmem:[#allocation2 + $0x4] sm:$0xf] %v984
  %v993 = vld [vmem:[#allocation2 + $0x8] sm:$0x1]
  %v994 = vsel %vm20, %v985, %v993
  %995 = vst [vmem:[#allocation2 + $0x8] sm:$0x1] %v994
  %v996 = vld [vmem:[#allocation2] sm:$0xf]
  %v997 = vld [vmem:[#allocation2 + $0x4] sm:$0xf]
  %v998 = vld [vmem:[%s2] sm:$0xf]
  %v999 = vld [vmem:[%s2 + $0x4] sm:$0xf]
  %v1000 = vld [vmem:[%s2 + $0x8] sm:$0xf]
  %v1001 = vld [vmem:[%s2 + $0xc] sm:$0xf]
  %v1002 = vld [vmem:[%s2 + $0x10] sm:$0xf]
  %v1003 = vld [vmem:[%s2 + $0x14] sm:$0xf]
  %v1004 = vld [vmem:[%s2 + $0x18] sm:$0xf]
  %v1005 = vld [vmem:[%s2 + $0x1c] sm:$0xf]
  %v1006 = vld [vmem:[%s2 + $0x20] sm:$0xf]
  %v1007 = vld [vmem:[%s2 + $0x24] sm:$0xf]
  %v1008 = vld [vmem:[%s2 + $0x28] sm:$0xf]
  %v1009 = vld [vmem:[%s2 + $0x2c] sm:$0xf]
  %v1010 = vld [vmem:[%s2 + $0x30] sm:$0xf]
  %v1011 = vld [vmem:[%s2 + $0x34] sm:$0xf]
  %v1012 = vld [vmem:[%s2 + $0x38] sm:$0xf]
  %v1013 = vld [vmem:[%s2 + $0x3c] sm:$0xf]
  %v1014 = vld [vmem:[#allocation2 + $0x8] sm:$0x1]
  %v1015 = vld [vmem:[%s354] sm:$0xf]
  %v1016 = vld [vmem:[%s354 + $0x4] sm:$0xf]
  %v1017 = vld [vmem:[%s354 + $0x8] sm:$0xf]
  %v1018 = vld [vmem:[%s354 + $0xc] sm:$0xf]
  %v1019 = vld [vmem:[%s354 + $0x10] sm:$0xf]
  %v1020 = vld [vmem:[%s354 + $0x14] sm:$0xf]
  %v1021 = vld [vmem:[%s354 + $0x18] sm:$0xf]
  %v1022 = vld [vmem:[%s354 + $0x1c] sm:$0xf]
  %v1023 = vld [vmem:[%s354 + $0x20] sm:$0xf]
  %v1024 = vld [vmem:[%s354 + $0x24] sm:$0xf]
  %v1025 = vld [vmem:[%s354 + $0x28] sm:$0xf]
  %v1026 = vld [vmem:[%s354 + $0x2c] sm:$0xf]
  %v1027 = vld [vmem:[%s354 + $0x30] sm:$0xf]
  %v1028 = vld [vmem:[%s354 + $0x34] sm:$0xf]
  %v1029 = vld [vmem:[%s354 + $0x38] sm:$0xf]
  %v1030 = vld [vmem:[%s354 + $0x3c] sm:$0xf]
  %v1034 = vunpack.c.l.b16 %v996
  %v1035 = vunpack.c.l.b16 %v997
  %v1036 = vunpack.c.l.b16 %v1014
  %v1037 = vpack.c.b16 %v1035, %v1034
  %v1038 = vpack.c.b16 %v1036, %v1036
  %v1040 = vshrl.u32 %v1037, 16
  %v1042 = vshll.u32 %v1037, 16
  %v1044 = vrot.slane %v1042, 1
  %v1045 = vor.u32 %v1040, %v1044
  %v1047 = vshll.u32 %v1038, 16
  %v1049 = vrot.slane %v1047, 1
  %v1050 = vsel %vm57, %v1045, %v1049
  %v1068 = vunpack.c.l.b16 %v1015
  %v1069 = vunpack.c.l.b16 %v1016
  %v1070 = vunpack.c.l.b16 %v1017
  %v1071 = vunpack.c.l.b16 %v1018
  %v1072 = vunpack.c.l.b16 %v1019
  %v1073 = vunpack.c.l.b16 %v1020
  %v1074 = vunpack.c.l.b16 %v1021
  %v1075 = vunpack.c.l.b16 %v1022
  %v1076 = vunpack.c.l.b16 %v1023
  %v1077 = vunpack.c.l.b16 %v1024
  %v1078 = vunpack.c.l.b16 %v1025
  %v1079 = vunpack.c.l.b16 %v1026
  %v1080 = vunpack.c.l.b16 %v1027
  %v1081 = vunpack.c.l.b16 %v1028
  %v1082 = vunpack.c.l.b16 %v1029
  %v1083 = vunpack.c.l.b16 %v1030
  %v1084 = vpack.c.b16 %v1069, %v1068
  %v1085 = vpack.c.b16 %v1071, %v1070
  %v1086 = vpack.c.b16 %v1073, %v1072
  %v1087 = vpack.c.b16 %v1075, %v1074
  %v1088 = vpack.c.b16 %v1077, %v1076
  %v1089 = vpack.c.b16 %v1079, %v1078
  %v1090 = vpack.c.b16 %v1081, %v1080
  %v1091 = vpack.c.b16 %v1083, %v1082
  %1100 = vmatprep.subr.bf16.mxu0 0
  %1101 = vmatpush1.bf16.msra.mxu0 %v1084
  %1102 = vmatprep.subr.bf16.mxu0 0
  %1103 = vmatpush1.bf16.msra.mxu0 %v1085
  %1104 = vmatprep.subr.bf16.mxu0 0
  %1105 = vmatpush1.bf16.msra.mxu0 %v1086
  %1106 = vmatprep.subr.bf16.mxu0 0
  %1107 = vmatpush1.bf16.msra.mxu0 %v1087
  %1108 = vmatprep.subr.bf16.mxu0 0
  %1109 = vmatpush1.bf16.msra.mxu0 %v1088
  %1110 = vmatprep.subr.bf16.mxu0 0
  %1111 = vmatpush1.bf16.msra.mxu0 %v1089
  %1112 = vmatprep.subr.bf16.mxu0 0
  %1113 = vmatpush1.bf16.msra.mxu0 %v1090
  %1114 = vmatprep.subr.bf16.mxu0 0
  %1115 = vmatpush1.bf16.msra.mxu0 %v1091
  %1116 = vmatprep.subr.bf16.mxu0 0
  %1117 = vmatpush1.bf16.msra.mxu0 0
  %1118 = vmatprep.subr.bf16.mxu0 0
  %1119 = vmatpush1.bf16.msra.mxu0 0
  %1120 = vmatprep.subr.bf16.mxu0 0
  %1121 = vmatpush1.bf16.msra.mxu0 0
  %1122 = vmatprep.subr.bf16.mxu0 0
  %1123 = vmatpush1.bf16.msra.mxu0 0
  %1124 = vmatprep.subr.bf16.mxu0 0
  %1125 = vmatpush1.bf16.msra.mxu0 0
  %1126 = vmatprep.subr.bf16.mxu0 0
  %1127 = vmatpush1.bf16.msra.mxu0 0
  %1128 = vmatprep.subr.bf16.mxu0 0
  %1129 = vmatpush1.bf16.msra.mxu0 0
  %1130 = vmatprep.subr.bf16.mxu0 0
  %1131 = vmatpush1.bf16.msra.mxu0 0
  %1132 = vmatprep.mubr.bf16.mxu0 0
  %1133 = vmatmul.mubr.bf16.gmra.mrb[0].mxu0 %v1050
  %v1134 = vpop.f32.mrb[0].mxu0
  %v1135 = vadd.f32 0.0, %v1134
  %v1136 = vpop.f32.mrb[0].mxu0
  %v1137 = vpop.f32.mrb[0].mxu0
  %v1138 = vadd.f32 0.0, %v1137
  %v1139 = vpop.f32.mrb[0].mxu0
  %1140 = vdwg.mxu0
  %v1158 = vunpack.c.l.b16 %v998
  %v1159 = vunpack.c.l.b16 %v999
  %v1160 = vunpack.c.l.b16 %v1000
  %v1161 = vunpack.c.l.b16 %v1001
  %v1162 = vunpack.c.l.b16 %v1002
  %v1163 = vunpack.c.l.b16 %v1003
  %v1164 = vunpack.c.l.b16 %v1004
  %v1165 = vunpack.c.l.b16 %v1005
  %v1166 = vunpack.c.l.b16 %v1006
  %v1167 = vunpack.c.l.b16 %v1007
  %v1168 = vunpack.c.l.b16 %v1008
  %v1169 = vunpack.c.l.b16 %v1009
  %v1170 = vunpack.c.l.b16 %v1010
  %v1171 = vunpack.c.l.b16 %v1011
  %v1172 = vunpack.c.l.b16 %v1012
  %v1173 = vunpack.c.l.b16 %v1013
  %v1174 = vpack.c.b16 %v1159, %v1158
  %v1175 = vpack.c.b16 %v1161, %v1160
  %v1176 = vpack.c.b16 %v1163, %v1162
  %v1177 = vpack.c.b16 %v1165, %v1164
  %v1178 = vpack.c.b16 %v1167, %v1166
  %v1179 = vpack.c.b16 %v1169, %v1168
  %v1180 = vpack.c.b16 %v1171, %v1170
  %v1181 = vpack.c.b16 %v1173, %v1172
  %1190 = vmatprep.subr.bf16.mxu0 0
  %1191 = vmatpush1.bf16.msra.mxu0 %v1174
  %1192 = vmatprep.subr.bf16.mxu0 0
  %1193 = vmatpush1.bf16.msra.mxu0 %v1175
  %1194 = vmatprep.subr.bf16.mxu0 0
  %1195 = vmatpush1.bf16.msra.mxu0 %v1176
  %1196 = vmatprep.subr.bf16.mxu0 0
  %1197 = vmatpush1.bf16.msra.mxu0 %v1177
  %1198 = vmatprep.subr.bf16.mxu0 0
  %1199 = vmatpush1.bf16.msra.mxu0 %v1178
  %1200 = vmatprep.subr.bf16.mxu0 0
  %1201 = vmatpush1.bf16.msra.mxu0 %v1179
  %1202 = vmatprep.subr.bf16.mxu0 0
  %1203 = vmatpush1.bf16.msra.mxu0 %v1180
  %1204 = vmatprep.subr.bf16.mxu0 0
  %1205 = vmatpush1.bf16.msra.mxu0 %v1181
  %1206 = vmatprep.subr.bf16.mxu0 0
  %1207 = vmatpush1.bf16.msra.mxu0 0
  %1208 = vmatprep.subr.bf16.mxu0 0
  %1209 = vmatpush1.bf16.msra.mxu0 0
  %1210 = vmatprep.subr.bf16.mxu0 0
  %1211 = vmatpush1.bf16.msra.mxu0 0
  %1212 = vmatprep.subr.bf16.mxu0 0
  %1213 = vmatpush1.bf16.msra.mxu0 0
  %1214 = vmatprep.subr.bf16.mxu0 0
  %1215 = vmatpush1.bf16.msra.mxu0 0
  %1216 = vmatprep.subr.bf16.mxu0 0
  %1217 = vmatpush1.bf16.msra.mxu0 0
  %1218 = vmatprep.subr.bf16.mxu0 0
  %1219 = vmatpush1.bf16.msra.mxu0 0
  %1220 = vmatprep.subr.bf16.mxu0 0
  %1221 = vmatpush1.bf16.msra.mxu0 0
  %1222 = vmatprep.mubr.bf16.mxu0 0
  %1223 = vmatmul.mubr.bf16.gmra.mrb[0].mxu0 %v1037
  %v1224 = vpop.f32.mrb[0].mxu0
  %v1225 = vadd.f32 %v1135, %v1224
  %v1226 = vpop.f32.mrb[0].mxu0
  %v1227 = vpop.f32.mrb[0].mxu0
  %v1228 = vadd.f32 %v1138, %v1227
  %v1229 = vpop.f32.mrb[0].mxu0
  %1230 = vdwg.mxu0
  %v1231 = vld [vmem:[#allocation2] sm:$0xe]
  %v1232 = vld [vmem:[%s572] sm:$0xf]
  %v1233 = vld [vmem:[%s572 + $0x4] sm:$0xf]
  %v1234 = vld [vmem:[%s572 + $0x8] sm:$0xf]
  %v1235 = vld [vmem:[%s572 + $0xc] sm:$0xf]
  %v1236 = vld [vmem:[%s572 + $0x10] sm:$0xf]
  %v1237 = vld [vmem:[%s572 + $0x14] sm:$0xf]
  %v1238 = vld [vmem:[%s572 + $0x18] sm:$0xf]
  %v1239 = vld [vmem:[%s572 + $0x1c] sm:$0xf]
  %v1240 = vld [vmem:[%s572 + $0x20] sm:$0xf]
  %v1241 = vld [vmem:[%s572 + $0x24] sm:$0xf]
  %v1242 = vld [vmem:[%s572 + $0x28] sm:$0xf]
  %v1243 = vld [vmem:[%s572 + $0x2c] sm:$0xf]
  %v1244 = vld [vmem:[%s572 + $0x30] sm:$0xf]
  %v1245 = vld [vmem:[%s572 + $0x34] sm:$0xf]
  %v1246 = vld [vmem:[%s572 + $0x38] sm:$0xf]
  %v1247 = vld [vmem:[%s572 + $0x3c] sm:$0xf]
  %v1249 = vunpack.c.l.b16 %v1231
  %v1250 = vpack.c.b16 %v1035, %v1249
  %v1251 = vrot.slane %v1250, 1
  %v1252 = vrot.slane %v1038, 1
  %v1253 = vsel %vm215, %v1251, %v1252
  %v1271 = vunpack.c.l.b16 %v1232
  %v1272 = vunpack.c.l.b16 %v1233
  %v1273 = vunpack.c.l.b16 %v1234
  %v1274 = vunpack.c.l.b16 %v1235
  %v1275 = vunpack.c.l.b16 %v1236
  %v1276 = vunpack.c.l.b16 %v1237
  %v1277 = vunpack.c.l.b16 %v1238
  %v1278 = vunpack.c.l.b16 %v1239
  %v1279 = vunpack.c.l.b16 %v1240
  %v1280 = vunpack.c.l.b16 %v1241
  %v1281 = vunpack.c.l.b16 %v1242
  %v1282 = vunpack.c.l.b16 %v1243
  %v1283 = vunpack.c.l.b16 %v1244
  %v1284 = vunpack.c.l.b16 %v1245
  %v1285 = vunpack.c.l.b16 %v1246
  %v1286 = vunpack.c.l.b16 %v1247
  %v1287 = vpack.c.b16 %v1272, %v1271
  %v1288 = vpack.c.b16 %v1274, %v1273
  %v1289 = vpack.c.b16 %v1276, %v1275
  %v1290 = vpack.c.b16 %v1278, %v1277
  %v1291 = vpack.c.b16 %v1280, %v1279
  %v1292 = vpack.c.b16 %v1282, %v1281
  %v1293 = vpack.c.b16 %v1284, %v1283
  %v1294 = vpack.c.b16 %v1286, %v1285
  %1303 = vmatprep.subr.bf16.mxu0 0
  %1304 = vmatpush1.bf16.msra.mxu0 %v1287
  %1305 = vmatprep.subr.bf16.mxu0 0
  %1306 = vmatpush1.bf16.msra.mxu0 %v1288
  %1307 = vmatprep.subr.bf16.mxu0 0
  %1308 = vmatpush1.bf16.msra.mxu0 %v1289
  %1309 = vmatprep.subr.bf16.mxu0 0
  %1310 = vmatpush1.bf16.msra.mxu0 %v1290
  %1311 = vmatprep.subr.bf16.mxu0 0
  %1312 = vmatpush1.bf16.msra.mxu0 %v1291
  %1313 = vmatprep.subr.bf16.mxu0 0
  %1314 = vmatpush1.bf16.msra.mxu0 %v1292
  %1315 = vmatprep.subr.bf16.mxu0 0
  %1316 = vmatpush1.bf16.msra.mxu0 %v1293
  %1317 = vmatprep.subr.bf16.mxu0 0
  %1318 = vmatpush1.bf16.msra.mxu0 %v1294
  %1319 = vmatprep.subr.bf16.mxu0 0
  %1320 = vmatpush1.bf16.msra.mxu0 0
  %1321 = vmatprep.subr.bf16.mxu0 0
  %1322 = vmatpush1.bf16.msra.mxu0 0
  %1323 = vmatprep.subr.bf16.mxu0 0
  %1324 = vmatpush1.bf16.msra.mxu0 0
  %1325 = vmatprep.subr.bf16.mxu0 0
  %1326 = vmatpush1.bf16.msra.mxu0 0
  %1327 = vmatprep.subr.bf16.mxu0 0
  %1328 = vmatpush1.bf16.msra.mxu0 0
  %1329 = vmatprep.subr.bf16.mxu0 0
  %1330 = vmatpush1.bf16.msra.mxu0 0
  %1331 = vmatprep.subr.bf16.mxu0 0
  %1332 = vmatpush1.bf16.msra.mxu0 0
  %1333 = vmatprep.subr.bf16.mxu0 0
  %1334 = vmatpush1.bf16.msra.mxu0 0
  %1335 = vmatprep.mubr.bf16.mxu0 0
  %1336 = vmatmul.mubr.bf16.gmra.mrb[0].mxu0 %v1253
  %v1337 = vpop.f32.mrb[0].mxu0
  %v1338 = vadd.f32 0.0, %v1337
  %v1339 = vpop.f32.mrb[0].mxu0
  %v1340 = vpop.f32.mrb[0].mxu0
  %v1341 = vadd.f32 0.0, %v1340
  %v1342 = vpop.f32.mrb[0].mxu0
  %1343 = vdwg.mxu0
  %v1344 = vadd.f32 %v1225, %v1338
  %v1345 = vadd.f32 %v1228, %v1341
  %v1346 = vld [vmem:[%s3 + $0x1] sm:$0x1]
  %v1347 = vlaneseq
  %v1348 = vshrl.u32 %v1347, 7
  %v1349 = vsub.s32 0, %v1348
  %v1350 = vrot.slane %v1346, %v1349
  %v1351 = vadd.f32 %v1344, %v1350
  %v1352 = vadd.f32 %v1345, %v1350
  %v1353 = vmax.f32 %v1351, 0.0
  %v1354 = vmax.f32 %v1352, 0.0
  %s1355 = scalar_lea.vmem %s4, 16
  %1356 = vst [vmem:[%s1355] sm:$0xff] %v1353
  %1357 = vst [vmem:[%s1355 + $0x8] sm:$0xff] %v1354
  // Predicated region
  $region18: #{b_pure_sparse_backbone_col_forward.1} parent=0 // pred_check
    _
  $region19: #{b_pure_sparse_backbone_col_forward.1} parent=0 // pred_check_branch
    %1359 = sbr.rel (0) target = $region21
  $region20: #{b_pure_sparse_backbone_col_forward.1} parent=0 // pred_region
    _
  $region21: #{b_pure_sparse_backbone_col_forward.1} parent=0 // pred_fallthru
    _
  // Predicated region
  $region22: #{b_pure_sparse_backbone_col_forward.1} parent=0 // pred_check
    _
  $region23: #{b_pure_sparse_backbone_col_forward.1} parent=0 // pred_check_branch
    %1361 = sbr.rel (0) target = $region25
  $region24: #{b_pure_sparse_backbone_col_forward.1} parent=0 // pred_region
    _
  $region25: #{b_pure_sparse_backbone_col_forward.1} parent=0 // pred_fallthru
    _

</llo_original>
